<compile_context>
chip_gen: v5e
topology: v5e:2x2
jax: 0.10.0
libtpu: 0.0.40
codegen_flags: <defaults>
</compile_context>

<pallas_src>
import math

import jax
import jax.numpy as jnp
from jax.experimental import pallas as pl
from jax.experimental.pallas import tpu as pltpu

BETA = 0.5
THRESHOLD = 14.0


def _softplus_beta(x):
    # torch.nn.Softplus(beta=0.5, threshold=14):
    #   y = (1/beta) * log(1 + exp(beta*x)),  but y = x where beta*x > threshold
    bx = BETA * x
    safe = jnp.minimum(bx, THRESHOLD)           # avoid exp overflow on untaken branch
    soft = jnp.log1p(jnp.exp(safe)) / BETA
    return jnp.where(bx > THRESHOLD, x, soft)


def veconv_kernel(src_ref, dst_ref, rbf_ref, edge_f_ref, node_ref,
                  w1_ref, b1_ref, w2_ref, b2_ref, w34_ref, b34_ref,
                  out_ref):
    e = pl.program_id(0)

    # Output stays resident across the edge (reduction) axis; init once.
    @pl.when(e == 0)
    def _init():
        out_ref[...] = jnp.zeros_like(out_ref)

    te = rbf_ref.shape[0]
    n_pad = node_ref.shape[0]

    # --- update_rbf: h = L2( softplus( L1(rbf) ) )  (per edge) ---
    h = jnp.dot(rbf_ref[...], w1_ref[...],
                preferred_element_type=jnp.float32) + b1_ref[...]
    h = _softplus_beta(h)                                  # f32 (v5e-safe transcendentals)
    h = jnp.dot(h.astype(jnp.bfloat16), w2_ref[...],
                preferred_element_type=jnp.float32) + b2_ref[...]

    # --- update_edge: edge_f' = L4(L3(edge_f)) folded to one matmul ---
    ef = jnp.dot(edge_f_ref[...], w34_ref[...],
                 preferred_element_type=jnp.float32) + b34_ref[...]

    # --- message: gather src node features via in-kernel one-hot (MXU) ---
    src_ids = src_ref[...]                                 # [TE, 1] int32
    src_oh = (jax.lax.broadcasted_iota(jnp.int32, (te, n_pad), 1)
              == src_ids).astype(jnp.bfloat16)             # [TE, N]
    src_feat = jnp.dot(src_oh, node_ref[...],
                       preferred_element_type=jnp.float32)
    m = src_feat * h + ef                                  # [TE, DIM] f32

    # --- reduce: scatter-sum messages into destination nodes ---
    dst_ids = dst_ref[...]                                 # [1, TE] int32 (-1 => padded edge)
    dst_oh_t = (jax.lax.broadcasted_iota(jnp.int32, (n_pad, te), 0)
                == dst_ids).astype(jnp.bfloat16)           # [N, TE]
    out_ref[...] += jnp.dot(dst_oh_t, m.astype(jnp.bfloat16),
                            preferred_element_type=jnp.float32)


def veconv_forward(rbf, edge_f, node_feat, src_idx, dst_idx, params,
                   *, edge_tile=128):
    E, rbf_dim = rbf.shape
    N, dim = node_feat.shape

    (w1, b1), (w2, b2), (w3, b3), (w4, b4) = params

    # Fold L3/L4 (no nonlinearity between them): x @ W34 + b34.
    w34 = w3.T @ w4.T                                      # [dim, dim] f32
    b34 = b3 @ w4.T + b4                                   # [dim]     f32

    # Pad edges to a multiple of edge_tile. Padded edges get dst = -1 so their
    # in-kernel scatter one-hot column is all-zero (they contribute nothing).
    e_pad = ((E + edge_tile - 1) // edge_tile) * edge_tile
    pad_e = e_pad - E
    n_pad = ((N + 7) // 8) * 8                             # sublane-align node table/output

    bf16 = jnp.bfloat16
    rbf_p = jnp.pad(rbf, ((0, pad_e), (0, 0))).astype(bf16)
    edge_f_p = jnp.pad(edge_f, ((0, pad_e), (0, 0))).astype(bf16)
    node_p = jnp.pad(node_feat, ((0, n_pad - N), (0, 0))).astype(bf16)
    src_p = jnp.pad(src_idx.astype(jnp.int32), (0, pad_e))[:, None]                       # [E_pad, 1]
    dst_p = jnp.pad(dst_idx.astype(jnp.int32), (0, pad_e), constant_values=-1)[None, :]   # [1, E_pad]

    args = (src_p, dst_p, rbf_p, edge_f_p, node_p,
            w1.T.astype(bf16), b1[None, :].astype(jnp.float32),
            w2.T.astype(bf16), b2[None, :].astype(jnp.float32),
            w34.astype(bf16), b34[None, :].astype(jnp.float32))

    in_specs = [
        pl.BlockSpec((edge_tile, 1), lambda e: (e, 0)),        # src indices
        pl.BlockSpec((1, edge_tile), lambda e: (0, e)),        # dst indices
        pl.BlockSpec((edge_tile, rbf_dim), lambda e: (e, 0)),  # rbf tile
        pl.BlockSpec((edge_tile, dim), lambda e: (e, 0)),      # edge_f tile
        pl.BlockSpec((n_pad, dim), lambda e: (0, 0)),          # node table (VMEM-resident)
        pl.BlockSpec((rbf_dim, dim), lambda e: (0, 0)),        # w1
        pl.BlockSpec((1, dim), lambda e: (0, 0)),              # b1
        pl.BlockSpec((dim, dim), lambda e: (0, 0)),            # w2
        pl.BlockSpec((1, dim), lambda e: (0, 0)),              # b2
        pl.BlockSpec((dim, dim), lambda e: (0, 0)),            # w34 (folded L3*L4)
        pl.BlockSpec((1, dim), lambda e: (0, 0)),              # b34
    ]
    out_spec = pl.BlockSpec((n_pad, dim), lambda e: (0, 0))    # resident accumulator

    flops = int(
        2 * e_pad * dim * (rbf_dim + dim + dim)        # L1 + L2 + folded L34
        + 4 * e_pad * n_pad * dim                      # one-hot gather + scatter matmuls
        + 4 * e_pad * dim)                             # elementwise message math
    bytes_accessed = int(
        2 * (rbf_p.size + edge_f_p.size + node_p.size
             + w1.size + w2.size + w34.size)           # bf16 operands
        + 4 * (3 * dim + 2 * e_pad + n_pad * dim))     # f32 biases, int32 idx, f32 out
    cost = pl.CostEstimate(flops=flops,
                           transcendentals=int(2 * e_pad * dim),
                           bytes_accessed=bytes_accessed)

    out = pl.pallas_call(
        veconv_kernel,
        out_shape=jax.ShapeDtypeStruct((n_pad, dim), jnp.float32),
        grid_spec=pltpu.PrefetchScalarGridSpec(
            num_scalar_prefetch=0,
            grid=(e_pad // edge_tile,),
            in_specs=in_specs,
            out_specs=out_spec),
        compiler_params=pltpu.CompilerParams(
            dimension_semantics=("arbitrary",),        # edge axis is a reduction
            vmem_limit_bytes=48 * 1024 * 1024),        # fits v7x's 64 MiB physical VMEM
        cost_estimate=cost,
    )(*args)
    return out[:N]


def _make_linear_params(key, in_dim, out_dim):
    kw, kb = jax.random.split(key)
    bound = 1.0 / math.sqrt(in_dim)
    w = jax.random.uniform(kw, (out_dim, in_dim), jnp.float32, -bound, bound)
    b = jax.random.uniform(kb, (out_dim,), jnp.float32, -bound, bound)
    return w, b


def _reference_forward(rbf, edge_f, node_feat, src_idx, dst_idx, params,
                       *, mimic_bf16):
    """Pure-JAX reference. If mimic_bf16, round operands at the same points the
    kernel does (bf16 MXU inputs, f32 accumulation) for a tight comparison."""
    (w1, b1), (w2, b2), (w3, b3), (w4, b4) = params
    w34 = w3.T @ w4.T
    b34 = b3 @ w4.T + b4

    def r(x):
        return x.astype(jnp.bfloat16).astype(jnp.float32) if mimic_bf16 else x

    h = r(rbf) @ r(w1.T) + b1
    h = _softplus_beta(h)
    h = r(h) @ r(w2.T) + b2
    ef = r(edge_f) @ r(w34) + b34
    m = r(node_feat)[src_idx] * h + ef
    m = r(m)
    return jnp.zeros_like(node_feat).at[dst_idx].add(m)


if __name__ == "__main__":
    # Small synthetic graph (exercises edge/node padding: E not a tile multiple,
    # N not a sublane multiple). Feature dims are lane-dense (128).
    N, E, RBF_DIM, DIM = 12, 250, 128, 128

    key = jax.random.PRNGKey(0)
    keys = jax.random.split(key, 9)

    rbf = jax.random.normal(keys[0], (E, RBF_DIM), jnp.float32)
    edge_f = jax.random.normal(keys[1], (E, DIM), jnp.float32)
    node_feat = jax.random.normal(keys[2], (N, DIM), jnp.float32)   # g.ndata['new_node']
    src_idx = jax.random.randint(keys[3], (E,), 0, N)
    dst_idx = jax.random.randint(keys[4], (E,), 0, N)

    params = (
        _make_linear_params(keys[5], RBF_DIM, DIM),  # linear_layer1
        _make_linear_params(keys[6], DIM, DIM),      # linear_layer2
        _make_linear_params(keys[7], DIM, DIM),      # linear_layer3
        _make_linear_params(keys[8], DIM, DIM),      # linear_layer4 (synthesized)
    )

    out = veconv_forward(rbf, edge_f, node_feat, src_idx, dst_idx, params)
    out = jax.block_until_ready(out)
    assert out.shape == (N, DIM)
    assert out.dtype == jnp.float32

    # Tight check vs a reference that mirrors the kernel's bf16 rounding points.
    ref_tight = _reference_forward(rbf, edge_f, node_feat, src_idx, dst_idx,
                                   params, mimic_bf16=True)
    assert jnp.allclose(out, ref_tight, atol=1e-3, rtol=1e-3), (
        float(jnp.max(jnp.abs(out - ref_tight))))

    # Loose sanity check vs the pure-f32 reference (bounds total bf16 drift).
    ref_f32 = _reference_forward(rbf, edge_f, node_feat, src_idx, dst_idx,
                                 params, mimic_bf16=False)
    scale = jnp.maximum(jnp.max(jnp.abs(ref_f32)), 1.0)
    assert jnp.max(jnp.abs(out - ref_f32)) <= 2e-2 * scale, (
        float(jnp.max(jnp.abs(out - ref_f32))), float(scale))

    print("KERNEL_OK")
</pallas_src>

<mosaic_0001>
module attributes {stable_mosaic.version = 11 : i64} {
  func.func @veconv_kernel(%arg0: i32, %arg1: memref<128x1xi32, #tpu.memory_space<vmem>>, %arg2: memref<1x128xi32, #tpu.memory_space<vmem>>, %arg3: memref<128x128xbf16, #tpu.memory_space<vmem>>, %arg4: memref<128x128xbf16, #tpu.memory_space<vmem>>, %arg5: memref<16x128xbf16, #tpu.memory_space<vmem>>, %arg6: memref<128x128xbf16, #tpu.memory_space<vmem>>, %arg7: memref<1x128xf32, #tpu.memory_space<vmem>>, %arg8: memref<128x128xbf16, #tpu.memory_space<vmem>>, %arg9: memref<1x128xf32, #tpu.memory_space<vmem>>, %arg10: memref<128x128xbf16, #tpu.memory_space<vmem>>, %arg11: memref<1x128xf32, #tpu.memory_space<vmem>>, %arg12: memref<16x128xf32, #tpu.memory_space<vmem>>) attributes {dimension_semantics = [#tpu.dimension_semantics<arbitrary>], iteration_bounds = array<i64: 2>, scalar_prefetch = 0 : i64, scratch_operands = 0 : i64, tpu.core_type = #tpu.core_type<tc>, window_params = [{transform_indices = @transform_0, window_bounds = array<i64: 128, 1>}, {transform_indices = @transform_1, window_bounds = array<i64: 1, 128>}, {transform_indices = @transform_2, window_bounds = array<i64: 128, 128>}, {transform_indices = @transform_3, window_bounds = array<i64: 128, 128>}, {pipeline_mode = #tpu.pipeline_mode<synchronous>, transform_indices = @transform_4, window_bounds = array<i64: 16, 128>}, {pipeline_mode = #tpu.pipeline_mode<synchronous>, transform_indices = @transform_5, window_bounds = array<i64: 128, 128>}, {pipeline_mode = #tpu.pipeline_mode<synchronous>, transform_indices = @transform_6, window_bounds = array<i64: 1, 128>}, {pipeline_mode = #tpu.pipeline_mode<synchronous>, transform_indices = @transform_7, window_bounds = array<i64: 128, 128>}, {pipeline_mode = #tpu.pipeline_mode<synchronous>, transform_indices = @transform_8, window_bounds = array<i64: 1, 128>}, {pipeline_mode = #tpu.pipeline_mode<synchronous>, transform_indices = @transform_9, window_bounds = array<i64: 128, 128>}, {pipeline_mode = #tpu.pipeline_mode<synchronous>, transform_indices = @transform_10, window_bounds = array<i64: 1, 128>}, {pipeline_mode = #tpu.pipeline_mode<synchronous>, transform_indices = @transform_11, window_bounds = array<i64: 16, 128>}]} {
    %c0_i32 = arith.constant 0 : i32
    %0 = arith.cmpi eq, %arg0, %c0_i32 : i32
    %1 = arith.extui %0 : i1 to i32
    %c0_i32_0 = arith.constant 0 : i32
    %2 = arith.cmpi ne, %1, %c0_i32_0 : i32
    scf.if %2 {
      %cst_34 = arith.constant 0.000000e+00 : f32
      %55 = vector.broadcast %cst_34 : f32 to vector<16x128xf32>
      %c0_35 = arith.constant 0 : index
      %c0_36 = arith.constant 0 : index
      %56 = vector.load %arg12[%c0_35, %c0_36] : memref<16x128xf32, #tpu.memory_space<vmem>>, vector<16x128xf32>
      tpu.vector_store %arg12[%c0_35, %c0_36], %55 {strides = array<i32>} : memref<16x128xf32, #tpu.memory_space<vmem>>, vector<16x128xf32>,
    } else {
    }
    %c0 = arith.constant 0 : index
    %c0_1 = arith.constant 0 : index
    %3 = vector.load %arg3[%c0, %c0_1] : memref<128x128xbf16, #tpu.memory_space<vmem>>, vector<128x128xbf16>
    %c0_2 = arith.constant 0 : index
    %c0_3 = arith.constant 0 : index
    %4 = vector.load %arg6[%c0_2, %c0_3] : memref<128x128xbf16, #tpu.memory_space<vmem>>, vector<128x128xbf16>
    %cst = arith.constant dense<0.000000e+00> : vector<128x128xf32>
    %5 = tpu.matmul %3, %4, %cst {dimension_numbers = #tpu.dot_dimension_numbers<[1], [0], [0], [1], [0, 0, 1, 1], [], []>} : vector<128x128xbf16>, vector<128x128xbf16>, vector<128x128xf32> -> vector<128x128xf32>
    %c0_4 = arith.constant 0 : index
    %c0_5 = arith.constant 0 : index
    %6 = vector.load %arg7[%c0_4, %c0_5] : memref<1x128xf32, #tpu.memory_space<vmem>>, vector<1x128xf32>
    %7 = vector.broadcast %6 : vector<1x128xf32> to vector<128x128xf32>
    %8 = arith.addf %5, %7 : vector<128x128xf32>
    %cst_6 = arith.constant 5.000000e-01 : f32
    %9 = vector.broadcast %cst_6 : f32 to vector<128x128xf32>
    %10 = arith.mulf %9, %8 : vector<128x128xf32>
    %cst_7 = arith.constant 1.400000e+01 : f32
    %11 = vector.broadcast %cst_7 : f32 to vector<128x128xf32>
    %12 = arith.minimumf %10, %11 : vector<128x128xf32>
    %13 = math.exp %12 : vector<128x128xf32>
    %14 = math.log1p %13 : vector<128x128xf32>
    %cst_8 = arith.constant 5.000000e-01 : f32
    %15 = vector.broadcast %cst_8 : f32 to vector<128x128xf32>
    %16 = arith.divf %14, %15 : vector<128x128xf32>
    %cst_9 = arith.constant 1.400000e+01 : f32
    %17 = vector.broadcast %cst_9 : f32 to vector<128x128xf32>
    %18 = arith.cmpf ogt, %10, %17 : vector<128x128xf32>
    %19 = arith.select %18, %8, %16 : vector<128x128xi1>, vector<128x128xf32>
    %20 = arith.truncf %19 : vector<128x128xf32> to vector<128x128xbf16>
    %c0_10 = arith.constant 0 : index
    %c0_11 = arith.constant 0 : index
    %21 = vector.load %arg8[%c0_10, %c0_11] : memref<128x128xbf16, #tpu.memory_space<vmem>>, vector<128x128xbf16>
    %cst_12 = arith.constant dense<0.000000e+00> : vector<128x128xf32>
    %22 = tpu.matmul %20, %21, %cst_12 {dimension_numbers = #tpu.dot_dimension_numbers<[1], [0], [0], [1], [0, 0, 1, 1], [], []>} : vector<128x128xbf16>, vector<128x128xbf16>, vector<128x128xf32> -> vector<128x128xf32>
    %c0_13 = arith.constant 0 : index
    %c0_14 = arith.constant 0 : index
    %23 = vector.load %arg9[%c0_13, %c0_14] : memref<1x128xf32, #tpu.memory_space<vmem>>, vector<1x128xf32>
    %24 = vector.broadcast %23 : vector<1x128xf32> to vector<128x128xf32>
    %25 = arith.addf %22, %24 : vector<128x128xf32>
    %c0_15 = arith.constant 0 : index
    %c0_16 = arith.constant 0 : index
    %26 = vector.load %arg4[%c0_15, %c0_16] : memref<128x128xbf16, #tpu.memory_space<vmem>>, vector<128x128xbf16>
    %c0_17 = arith.constant 0 : index
    %c0_18 = arith.constant 0 : index
    %27 = vector.load %arg10[%c0_17, %c0_18] : memref<128x128xbf16, #tpu.memory_space<vmem>>, vector<128x128xbf16>
    %cst_19 = arith.constant dense<0.000000e+00> : vector<128x128xf32>
    %28 = tpu.matmul %26, %27, %cst_19 {dimension_numbers = #tpu.dot_dimension_numbers<[1], [0], [0], [1], [0, 0, 1, 1], [], []>} : vector<128x128xbf16>, vector<128x128xbf16>, vector<128x128xf32> -> vector<128x128xf32>
    %c0_20 = arith.constant 0 : index
    %c0_21 = arith.constant 0 : index
    %29 = vector.load %arg11[%c0_20, %c0_21] : memref<1x128xf32, #tpu.memory_space<vmem>>, vector<1x128xf32>
    %30 = vector.broadcast %29 : vector<1x128xf32> to vector<128x128xf32>
    %31 = arith.addf %28, %30 : vector<128x128xf32>
    %c0_22 = arith.constant 0 : index
    %c0_23 = arith.constant 0 : index
    %32 = vector.load %arg1[%c0_22, %c0_23] : memref<128x1xi32, #tpu.memory_space<vmem>>, vector<128x1xi32>
    %33 = tpu.iota {dimensions = array<i32: 1>} : vector<128x16xi32>
    %34 = vector.broadcast %32 : vector<128x1xi32> to vector<128x16xi32>
    %35 = arith.cmpi eq, %33, %34 : vector<128x16xi32>
    %36 = arith.extui %35 : vector<128x16xi1> to vector<128x16xi32>
    %37 = arith.sitofp %36 : vector<128x16xi32> to vector<128x16xf32>
    %38 = arith.truncf %37 : vector<128x16xf32> to vector<128x16xbf16>
    %c0_24 = arith.constant 0 : index
    %c0_25 = arith.constant 0 : index
    %39 = vector.load %arg5[%c0_24, %c0_25] : memref<16x128xbf16, #tpu.memory_space<vmem>>, vector<16x128xbf16>
    %cst_26 = arith.constant dense<0.000000e+00> : vector<128x128xf32>
    %40 = tpu.matmul %38, %39, %cst_26 {dimension_numbers = #tpu.dot_dimension_numbers<[1], [0], [0], [1], [0, 0, 1, 1], [], []>} : vector<128x16xbf16>, vector<16x128xbf16>, vector<128x128xf32> -> vector<128x128xf32>
    %41 = arith.mulf %40, %25 : vector<128x128xf32>
    %42 = arith.addf %41, %31 : vector<128x128xf32>
    %c0_27 = arith.constant 0 : index
    %c0_28 = arith.constant 0 : index
    %43 = vector.load %arg2[%c0_27, %c0_28] : memref<1x128xi32, #tpu.memory_space<vmem>>, vector<1x128xi32>
    %44 = tpu.iota {dimensions = array<i32: 0>} : vector<16x128xi32>
    %45 = vector.broadcast %43 : vector<1x128xi32> to vector<16x128xi32>
    %46 = arith.cmpi eq, %44, %45 : vector<16x128xi32>
    %47 = arith.extui %46 : vector<16x128xi1> to vector<16x128xi32>
    %48 = arith.sitofp %47 : vector<16x128xi32> to vector<16x128xf32>
    %49 = arith.truncf %48 : vector<16x128xf32> to vector<16x128xbf16>
    %c0_29 = arith.constant 0 : index
    %c0_30 = arith.constant 0 : index
    %50 = vector.load %arg12[%c0_29, %c0_30] : memref<16x128xf32, #tpu.memory_space<vmem>>, vector<16x128xf32>
    %51 = arith.truncf %42 : vector<128x128xf32> to vector<128x128xbf16>
    %cst_31 = arith.constant dense<0.000000e+00> : vector<16x128xf32>
    %52 = tpu.matmul %49, %51, %cst_31 {dimension_numbers = #tpu.dot_dimension_numbers<[1], [0], [0], [1], [0, 0, 1, 1], [], []>} : vector<16x128xbf16>, vector<128x128xbf16>, vector<16x128xf32> -> vector<16x128xf32>
    %53 = arith.addf %50, %52 : vector<16x128xf32>
    %c0_32 = arith.constant 0 : index
    %c0_33 = arith.constant 0 : index
    %54 = vector.load %arg12[%c0_32, %c0_33] : memref<16x128xf32, #tpu.memory_space<vmem>>, vector<16x128xf32>
    tpu.vector_store %arg12[%c0_32, %c0_33], %53 {strides = array<i32>} : memref<16x128xf32, #tpu.memory_space<vmem>>, vector<16x128xf32>,
    return
  }
  func.func @transform_0(%arg0: i32) -> (i32, i32) {
    %c0_i32 = arith.constant 0 : i32
    %c0_i32_0 = arith.constant 0 : i32
    return %arg0, %c0_i32 : i32, i32
  }
  func.func @transform_1(%arg0: i32) -> (i32, i32) {
    %c0_i32 = arith.constant 0 : i32
    %c0_i32_0 = arith.constant 0 : i32
    return %c0_i32, %arg0 : i32, i32
  }
  func.func @transform_2(%arg0: i32) -> (i32, i32) {
    %c0_i32 = arith.constant 0 : i32
    %c0_i32_0 = arith.constant 0 : i32
    return %arg0, %c0_i32 : i32, i32
  }
  func.func @transform_3(%arg0: i32) -> (i32, i32) {
    %c0_i32 = arith.constant 0 : i32
    %c0_i32_0 = arith.constant 0 : i32
    return %arg0, %c0_i32 : i32, i32
  }
  func.func @transform_4(%arg0: i32) -> (i32, i32) {
    %c0_i32 = arith.constant 0 : i32
    %c0_i32_0 = arith.constant 0 : i32
    %c0_i32_1 = arith.constant 0 : i32
    return %c0_i32, %c0_i32_0 : i32, i32
  }
  func.func @transform_5(%arg0: i32) -> (i32, i32) {
    %c0_i32 = arith.constant 0 : i32
    %c0_i32_0 = arith.constant 0 : i32
    %c0_i32_1 = arith.constant 0 : i32
    return %c0_i32, %c0_i32_0 : i32, i32
  }
  func.func @transform_6(%arg0: i32) -> (i32, i32) {
    %c0_i32 = arith.constant 0 : i32
    %c0_i32_0 = arith.constant 0 : i32
    %c0_i32_1 = arith.constant 0 : i32
    return %c0_i32, %c0_i32_0 : i32, i32
  }
  func.func @transform_7(%arg0: i32) -> (i32, i32) {
    %c0_i32 = arith.constant 0 : i32
    %c0_i32_0 = arith.constant 0 : i32
    %c0_i32_1 = arith.constant 0 : i32
    return %c0_i32, %c0_i32_0 : i32, i32
  }
  func.func @transform_8(%arg0: i32) -> (i32, i32) {
    %c0_i32 = arith.constant 0 : i32
    %c0_i32_0 = arith.constant 0 : i32
    %c0_i32_1 = arith.constant 0 : i32
    return %c0_i32, %c0_i32_0 : i32, i32
  }
  func.func @transform_9(%arg0: i32) -> (i32, i32) {
    %c0_i32 = arith.constant 0 : i32
    %c0_i32_0 = arith.constant 0 : i32
    %c0_i32_1 = arith.constant 0 : i32
    return %c0_i32, %c0_i32_0 : i32, i32
  }
  func.func @transform_10(%arg0: i32) -> (i32, i32) {
    %c0_i32 = arith.constant 0 : i32
    %c0_i32_0 = arith.constant 0 : i32
    %c0_i32_1 = arith.constant 0 : i32
    return %c0_i32, %c0_i32_0 : i32, i32
  }
  func.func @transform_11(%arg0: i32) -> (i32, i32) {
    %c0_i32 = arith.constant 0 : i32
    %c0_i32_0 = arith.constant 0 : i32
    %c0_i32_1 = arith.constant 0 : i32
    return %c0_i32, %c0_i32_0 : i32, i32
  }
}

</mosaic_0001>

<llo_original>
// kernel: tpu_custom_call.1
$region0: #{tpu_custom_call.1}
  #allocation0 [shape = 'u32[]', space=smem, size = 0x4, offset = 0x4, fixed_abs, tag = 'smem constant byte address 0x4 - core index']
  #allocation1 [shape = 'u32[72,128]{1,0:T(1,128)}', space=vmem, size = 0x9000, scoped, tag = 'internal scratch']
  %s0 = inlined_call_operand.vmem [shape: s32[256,1], index: 0, kind: input, shape index: {}]
  %s1 = inlined_call_operand.vmem [shape: s32[1,256], index: 1, kind: input, shape index: {}]
  %s2 = inlined_call_operand.vmem [shape: bf16[256,128], index: 2, kind: input, shape index: {}]
  %s3 = inlined_call_operand.vmem [shape: bf16[256,128], index: 3, kind: input, shape index: {}]
  %s4 = inlined_call_operand.hbm [shape: bf16[16,128], index: 4, kind: input, shape index: {}]
  %s5 = inlined_call_operand.hbm [shape: bf16[128,128], index: 5, kind: input, shape index: {}]
  %s6 = inlined_call_operand.vmem [shape: f32[1,128], index: 6, kind: input, shape index: {}]
  %s7 = inlined_call_operand.hbm [shape: bf16[128,128], index: 7, kind: input, shape index: {}]
  %s8 = inlined_call_operand.vmem [shape: f32[1,128], index: 8, kind: input, shape index: {}]
  %s9 = inlined_call_operand.hbm [shape: bf16[128,128], index: 9, kind: input, shape index: {}]
  %s10 = inlined_call_operand.vmem [shape: f32[1,128], index: 10, kind: input, shape index: {}]
  %s11 = inlined_call_operand.hbm [shape: f32[16,128], index: 11, kind: output, shape index: {}]
  %s12 = sld [smem:[#allocation0]]
  $region97: #{tpu_custom_call.1} parent=0
    _
  %s14 = ssub.s32 1, %s12
  %s15 = scalar_select 0, %s14, %s12
  $region1: #{tpu_custom_call.1} parent=0
    #allocation2 [shape = 'u8[4096]{0}', space=vmem, size = 0x1000, scoped, tag = 'input window, operand 4, single buffered']
    #allocation3 [shape = 's32[2]{0}', space=sflag, size = 0x8, scoped, tag = 'scoped memory for tpu_custom_call.1']
    #allocation4 [shape = 's32[2]{0}', space=sflag, size = 0x8, scoped, tag = 'scoped memory for tpu_custom_call.1']
    #allocation5 [shape = 'u8[32768]{0}', space=vmem, size = 0x8000, scoped, tag = 'input window, operand 5, single buffered']
    #allocation6 [shape = 's32[1]{0}', space=sflag, size = 0x4, scoped, tag = 'scoped memory for tpu_custom_call.1']
    #allocation7 [shape = 'u8[32768]{0}', space=vmem, size = 0x8000, scoped, tag = 'input window, operand 7, single buffered']
    #allocation8 [shape = 'u8[32768]{0}', space=vmem, size = 0x8000, scoped, tag = 'input window, operand 9, single buffered']
    #allocation9 [shape = 's32[1]{0}', space=sflag, size = 0x4, scoped, tag = 'scoped memory for tpu_custom_call.1']
    #allocation10 [shape = 'u8[8192]{0}', space=vmem, size = 0x2000, scoped, tag = 'output window, operand 0, single buffered']
    %16 = vsyncpa [#allocation3], 0
    %17 = vsyncpa [#allocation6], 0
    %18 = vsyncpa [#allocation9], 0
    %19 = vsyncpa [#allocation4], 0
    loop: start=0, step=1, limit=4
    $region2: #{tpu_custom_call.1} parent=1 // loop_pre_header
      _
    $region3: #{tpu_custom_call.1} parent=1 // loop_header
      %s21 = sphi 0, %s25
      %p22 = scmp.ge.s32.totalorder %s21, 4
      %s31 = sphi 0, %s33
      %s34 = sphi 0, %s31
      %s35 = sphi 0, %s34
      %s51 = sphi 0, %s35
      %s57 = sphi 0, %s59
      %s60 = sphi 0, %s57
      %s61 = sphi 0, %s60
      %s77 = sphi 0, %s61
      %s83 = sphi 0, %s85
      %s86 = sphi 0, %s83
      %s87 = sphi 0, %s86
      %s103 = sphi 0, %s87
      %s109 = sphi 0, %s111
      %s112 = sphi 0, %s109
      %s113 = sphi 0, %s112
      %s129 = sphi 0, %s113
      %s133 = sphi 0, %s133
      %s135 = sphi 0, %s133
      %s136 = sphi 0, %s135
      %s150 = sphi 0, %s136
      %s154 = sphi 0, %s154
      %s156 = sphi 0, %s154
      %s157 = sphi 0, %s156
      %s171 = sphi 0, %s157
      %s175 = sphi 0, %s175
      %s177 = sphi 0, %s175
      %s178 = sphi 0, %s177
      %s192 = sphi 0, %s178
      %s196 = sphi 0, %s196
      %s198 = sphi 0, %s196
      %s199 = sphi 0, %s198
      %s213 = sphi 0, %s199
      %s217 = sphi 0, %s217
      %s219 = sphi 0, %s217
      %s220 = sphi 0, %s219
      %s234 = sphi 0, %s220
      %s238 = sphi 0, %s238
      %s240 = sphi 0, %s238
      %s241 = sphi 0, %s240
      %s255 = sphi 0, %s241
      %s259 = sphi 0, %s259
      %s261 = sphi 0, %s259
      %s262 = sphi 0, %s261
      %s276 = sphi 0, %s262
      %s280 = sphi 0, %s280
      %s282 = sphi 0, %s280
      %s283 = sphi 0, %s282
      %s297 = sphi 0, %s283
    $region4: #{tpu_custom_call.1} parent=1 // loop_header_branch
      %24 = sbr.rel (%p22) target = $region8
    $region5: #{tpu_custom_call.1} parent=1 // loop_body
      %s26 = ssub.s32 %s21, 1
      %s27 = ssub.s32 %s21, 2
      %s28 = sadd.s32 %s21, 1
      %s29 = ssub.s32 %s21, %s28
      %p30 = scmp.eq.s32.totalorder %s29, 0
      %s32 = sadd.s32 %s31, 1
      %s33 = scalar_select %p30, %s31, %s32
      %p36 = pneg %p30
      %p37 = scmp.eq.s32.totalorder %s21, 1
      %p38 = por %p36, %p37
      %p39 = scmp.ne.s32.totalorder %s31, %s34
      %p40 = scmp.eq.s32.totalorder %s21, 0
      %p41 = por %p39, %p40
      %p42 = scmp.ne.s32.totalorder %s31, %s34
      %p43 = scmp.eq.s32.totalorder %s26, 1
      %p44 = por %p42, %p43
      %p45 = scmp.ne.s32.totalorder %s34, %s35
      %p46 = scmp.eq.s32.totalorder %s26, 0
      %p47 = por %p45, %p46
      %p48 = scmp.ne.s32.totalorder %s34, %s35
      %p49 = scmp.eq.s32.totalorder %s27, 1
      %p50 = por %p48, %p49
      %p52 = scmp.ne.s32.totalorder %s35, %s51
      %p53 = scmp.eq.s32.totalorder %s27, 0
      %p54 = por %p52, %p53
      %s55 = ssub.s32 %s21, %s28
      %p56 = scmp.eq.s32.totalorder %s55, 0
      %s58 = sadd.s32 %s57, 1
      %s59 = scalar_select %p56, %s57, %s58
      %p62 = pneg %p56
      %p63 = scmp.eq.s32.totalorder %s21, 1
      %p64 = por %p62, %p63
      %p65 = scmp.ne.s32.totalorder %s57, %s60
      %p66 = scmp.eq.s32.totalorder %s21, 0
      %p67 = por %p65, %p66
      %p68 = scmp.ne.s32.totalorder %s57, %s60
      %p69 = scmp.eq.s32.totalorder %s26, 1
      %p70 = por %p68, %p69
      %p71 = scmp.ne.s32.totalorder %s60, %s61
      %p72 = scmp.eq.s32.totalorder %s26, 0
      %p73 = por %p71, %p72
      %p74 = scmp.ne.s32.totalorder %s60, %s61
      %p75 = scmp.eq.s32.totalorder %s27, 1
      %p76 = por %p74, %p75
      %p78 = scmp.ne.s32.totalorder %s61, %s77
      %p79 = scmp.eq.s32.totalorder %s27, 0
      %p80 = por %p78, %p79
      %s81 = ssub.s32 %s21, %s28
      %p82 = scmp.eq.s32.totalorder %s81, 0
      %s84 = sadd.s32 %s83, 1
      %s85 = scalar_select %p82, %s83, %s84
      %p88 = pneg %p82
      %p89 = scmp.eq.s32.totalorder %s21, 1
      %p90 = por %p88, %p89
      %p91 = scmp.ne.s32.totalorder %s83, %s86
      %p92 = scmp.eq.s32.totalorder %s21, 0
      %p93 = por %p91, %p92
      %p94 = scmp.ne.s32.totalorder %s83, %s86
      %p95 = scmp.eq.s32.totalorder %s26, 1
      %p96 = por %p94, %p95
      %p97 = scmp.ne.s32.totalorder %s86, %s87
      %p98 = scmp.eq.s32.totalorder %s26, 0
      %p99 = por %p97, %p98
      %p100 = scmp.ne.s32.totalorder %s86, %s87
      %p101 = scmp.eq.s32.totalorder %s27, 1
      %p102 = por %p100, %p101
      %p104 = scmp.ne.s32.totalorder %s87, %s103
      %p105 = scmp.eq.s32.totalorder %s27, 0
      %p106 = por %p104, %p105
      %s107 = ssub.s32 %s21, %s28
      %p108 = scmp.eq.s32.totalorder %s107, 0
      %s110 = sadd.s32 %s109, 1
      %s111 = scalar_select %p108, %s109, %s110
      %p114 = pneg %p108
      %p115 = scmp.eq.s32.totalorder %s21, 1
      %p116 = por %p114, %p115
      %p117 = scmp.ne.s32.totalorder %s109, %s112
      %p118 = scmp.eq.s32.totalorder %s21, 0
      %p119 = por %p117, %p118
      %p120 = scmp.ne.s32.totalorder %s109, %s112
      %p121 = scmp.eq.s32.totalorder %s26, 1
      %p122 = por %p120, %p121
      %p123 = scmp.ne.s32.totalorder %s112, %s113
      %p124 = scmp.eq.s32.totalorder %s26, 0
      %p125 = por %p123, %p124
      %p126 = scmp.ne.s32.totalorder %s112, %s113
      %p127 = scmp.eq.s32.totalorder %s27, 1
      %p128 = por %p126, %p127
      %p130 = scmp.ne.s32.totalorder %s113, %s129
      %p131 = scmp.eq.s32.totalorder %s27, 0
      %p132 = por %p130, %p131
      %s134 = sadd.s32 %s133, 1
      %p137 = scmp.eq.s32.totalorder %s21, 1
      %p138 = scmp.ne.s32.totalorder %s133, %s135
      %p139 = scmp.eq.s32.totalorder %s21, 0
      %p140 = por %p138, %p139
      %p141 = scmp.ne.s32.totalorder %s133, %s135
      %p142 = scmp.eq.s32.totalorder %s26, 1
      %p143 = por %p141, %p142
      %p144 = scmp.ne.s32.totalorder %s135, %s136
      %p145 = scmp.eq.s32.totalorder %s26, 0
      %p146 = por %p144, %p145
      %p147 = scmp.ne.s32.totalorder %s135, %s136
      %p148 = scmp.eq.s32.totalorder %s27, 1
      %p149 = por %p147, %p148
      %p151 = scmp.ne.s32.totalorder %s136, %s150
      %p152 = scmp.eq.s32.totalorder %s27, 0
      %p153 = por %p151, %p152
      %s155 = sadd.s32 %s154, 1
      %p158 = scmp.eq.s32.totalorder %s21, 1
      %p159 = scmp.ne.s32.totalorder %s154, %s156
      %p160 = scmp.eq.s32.totalorder %s21, 0
      %p161 = por %p159, %p160
      %p162 = scmp.ne.s32.totalorder %s154, %s156
      %p163 = scmp.eq.s32.totalorder %s26, 1
      %p164 = por %p162, %p163
      %p165 = scmp.ne.s32.totalorder %s156, %s157
      %p166 = scmp.eq.s32.totalorder %s26, 0
      %p167 = por %p165, %p166
      %p168 = scmp.ne.s32.totalorder %s156, %s157
      %p169 = scmp.eq.s32.totalorder %s27, 1
      %p170 = por %p168, %p169
      %p172 = scmp.ne.s32.totalorder %s157, %s171
      %p173 = scmp.eq.s32.totalorder %s27, 0
      %p174 = por %p172, %p173
      %s176 = sadd.s32 %s175, 1
      %p179 = scmp.eq.s32.totalorder %s21, 1
      %p180 = scmp.ne.s32.totalorder %s175, %s177
      %p181 = scmp.eq.s32.totalorder %s21, 0
      %p182 = por %p180, %p181
      %p183 = scmp.ne.s32.totalorder %s175, %s177
      %p184 = scmp.eq.s32.totalorder %s26, 1
      %p185 = por %p183, %p184
      %p186 = scmp.ne.s32.totalorder %s177, %s178
      %p187 = scmp.eq.s32.totalorder %s26, 0
      %p188 = por %p186, %p187
      %p189 = scmp.ne.s32.totalorder %s177, %s178
      %p190 = scmp.eq.s32.totalorder %s27, 1
      %p191 = por %p189, %p190
      %p193 = scmp.ne.s32.totalorder %s178, %s192
      %p194 = scmp.eq.s32.totalorder %s27, 0
      %p195 = por %p193, %p194
      %s197 = sadd.s32 %s196, 1
      %p200 = scmp.eq.s32.totalorder %s21, 1
      %p201 = scmp.ne.s32.totalorder %s196, %s198
      %p202 = scmp.eq.s32.totalorder %s21, 0
      %p203 = por %p201, %p202
      %p204 = scmp.ne.s32.totalorder %s196, %s198
      %p205 = scmp.eq.s32.totalorder %s26, 1
      %p206 = por %p204, %p205
      %p207 = scmp.ne.s32.totalorder %s198, %s199
      %p208 = scmp.eq.s32.totalorder %s26, 0
      %p209 = por %p207, %p208
      %p210 = scmp.ne.s32.totalorder %s198, %s199
      %p211 = scmp.eq.s32.totalorder %s27, 1
      %p212 = por %p210, %p211
      %p214 = scmp.ne.s32.totalorder %s199, %s213
      %p215 = scmp.eq.s32.totalorder %s27, 0
      %p216 = por %p214, %p215
      %s218 = sadd.s32 %s217, 1
      %p221 = scmp.eq.s32.totalorder %s21, 1
      %p222 = scmp.ne.s32.totalorder %s217, %s219
      %p223 = scmp.eq.s32.totalorder %s21, 0
      %p224 = por %p222, %p223
      %p225 = scmp.ne.s32.totalorder %s217, %s219
      %p226 = scmp.eq.s32.totalorder %s26, 1
      %p227 = por %p225, %p226
      %p228 = scmp.ne.s32.totalorder %s219, %s220
      %p229 = scmp.eq.s32.totalorder %s26, 0
      %p230 = por %p228, %p229
      %p231 = scmp.ne.s32.totalorder %s219, %s220
      %p232 = scmp.eq.s32.totalorder %s27, 1
      %p233 = por %p231, %p232
      %p235 = scmp.ne.s32.totalorder %s220, %s234
      %p236 = scmp.eq.s32.totalorder %s27, 0
      %p237 = por %p235, %p236
      %s239 = sadd.s32 %s238, 1
      %p242 = scmp.eq.s32.totalorder %s21, 1
      %p243 = scmp.ne.s32.totalorder %s238, %s240
      %p244 = scmp.eq.s32.totalorder %s21, 0
      %p245 = por %p243, %p244
      %p246 = scmp.ne.s32.totalorder %s238, %s240
      %p247 = scmp.eq.s32.totalorder %s26, 1
      %p248 = por %p246, %p247
      %p249 = scmp.ne.s32.totalorder %s240, %s241
      %p250 = scmp.eq.s32.totalorder %s26, 0
      %p251 = por %p249, %p250
      %p252 = scmp.ne.s32.totalorder %s240, %s241
      %p253 = scmp.eq.s32.totalorder %s27, 1
      %p254 = por %p252, %p253
      %p256 = scmp.ne.s32.totalorder %s241, %s255
      %p257 = scmp.eq.s32.totalorder %s27, 0
      %p258 = por %p256, %p257
      %s260 = sadd.s32 %s259, 1
      %p263 = scmp.eq.s32.totalorder %s21, 1
      %p264 = scmp.ne.s32.totalorder %s259, %s261
      %p265 = scmp.eq.s32.totalorder %s21, 0
      %p266 = por %p264, %p265
      %p267 = scmp.ne.s32.totalorder %s259, %s261
      %p268 = scmp.eq.s32.totalorder %s26, 1
      %p269 = por %p267, %p268
      %p270 = scmp.ne.s32.totalorder %s261, %s262
      %p271 = scmp.eq.s32.totalorder %s26, 0
      %p272 = por %p270, %p271
      %p273 = scmp.ne.s32.totalorder %s261, %s262
      %p274 = scmp.eq.s32.totalorder %s27, 1
      %p275 = por %p273, %p274
      %p277 = scmp.ne.s32.totalorder %s262, %s276
      %p278 = scmp.eq.s32.totalorder %s27, 0
      %p279 = por %p277, %p278
      %s281 = sadd.s32 %s280, 1
      %p284 = scmp.eq.s32.totalorder %s21, 1
      %p285 = scmp.ne.s32.totalorder %s280, %s282
      %p286 = scmp.eq.s32.totalorder %s21, 0
      %p287 = por %p285, %p286
      %p288 = scmp.ne.s32.totalorder %s280, %s282
      %p289 = scmp.eq.s32.totalorder %s26, 1
      %p290 = por %p288, %p289
      %p291 = scmp.ne.s32.totalorder %s282, %s283
      %p292 = scmp.eq.s32.totalorder %s26, 0
      %p293 = por %p291, %p292
      %p294 = scmp.ne.s32.totalorder %s282, %s283
      %p295 = scmp.eq.s32.totalorder %s27, 1
      %p296 = por %p294, %p295
      %p298 = scmp.ne.s32.totalorder %s283, %s297
      %p299 = scmp.eq.s32.totalorder %s27, 0
      %p300 = por %p298, %p299
      %p301 = scmp.le.s32.totalorder 1, %s21
      %p302 = scmp.lt.s32.totalorder %s21, 3
      %p303 = pnand %p301, %p302
      %p304 = pneg %p303
      // Predicated region
      $region9: #{tpu_custom_call.1} parent=5 // pred_check
        _
      $region10: #{tpu_custom_call.1} parent=5 // pred_check_branch
        %306 = sbr.rel (%p303) target = $region12
      $region11: #{tpu_custom_call.1} parent=5 // pred_region
        %s307 = ssub.s32 %s21, 1
        // Predicated region
        $region13: #{tpu_custom_call.1} parent=11 // pred_check
          %p308 = pneg %p146
        $region14: #{tpu_custom_call.1} parent=11 // pred_check_branch
          %310 = sbr.rel (%p308) target = $region16
        $region15: #{tpu_custom_call.1} parent=11 // pred_region
          %312 = vsyncadd [#allocation3], 0
          %s313 = sshll.u32 %s4, 4
          %s314 = int_to_ptr.hbm [resolvable:$true] %s313
          %s315 = sshll.u32 [#allocation2], 4
          %s316 = int_to_ptr.vmem [resolvable:$true] %s315
          %321 = dma.hbm_to_vmem [thread:$0]  %s314, 128, %s316, [#allocation3], 64, 64, 4
        $region16: #{tpu_custom_call.1} parent=11 // pred_fallthru
          _
        // Predicated region
        $region17: #{tpu_custom_call.1} parent=11 // pred_check
          %p322 = pneg %p167
        $region18: #{tpu_custom_call.1} parent=11 // pred_check_branch
          %324 = sbr.rel (%p322) target = $region20
        $region19: #{tpu_custom_call.1} parent=11 // pred_region
          %326 = vsyncadd [#allocation6], 0
          %s327 = sshll.u32 %s5, 4
          %s328 = int_to_ptr.hbm [resolvable:$true] %s327
          %s329 = sshll.u32 [#allocation5], 4
          %s330 = int_to_ptr.vmem [resolvable:$true] %s329
          %335 = dma.hbm_to_vmem [thread:$0]  %s328, 1024, %s330, [#allocation6], 64, 64, 4
        $region20: #{tpu_custom_call.1} parent=11 // pred_fallthru
          _
        // Predicated region
        $region21: #{tpu_custom_call.1} parent=11 // pred_check
          %p336 = pneg %p188
        $region22: #{tpu_custom_call.1} parent=11 // pred_check_branch
          %338 = sbr.rel (%p336) target = $region24
        $region23: #{tpu_custom_call.1} parent=11 // pred_region
          _
        $region24: #{tpu_custom_call.1} parent=11 // pred_fallthru
          _
        // Predicated region
        $region25: #{tpu_custom_call.1} parent=11 // pred_check
          %p339 = pneg %p209
        $region26: #{tpu_custom_call.1} parent=11 // pred_check_branch
          %341 = sbr.rel (%p339) target = $region28
        $region27: #{tpu_custom_call.1} parent=11 // pred_region
          %343 = vsyncadd [#allocation6], 0
          %s344 = sshll.u32 %s7, 4
          %s345 = int_to_ptr.hbm [resolvable:$true] %s344
          %s346 = sshll.u32 [#allocation7], 4
          %s347 = int_to_ptr.vmem [resolvable:$true] %s346
          %352 = dma.hbm_to_vmem [thread:$0]  %s345, 1024, %s347, [#allocation6], 64, 64, 4
        $region28: #{tpu_custom_call.1} parent=11 // pred_fallthru
          _
        // Predicated region
        $region29: #{tpu_custom_call.1} parent=11 // pred_check
          %p353 = pneg %p230
        $region30: #{tpu_custom_call.1} parent=11 // pred_check_branch
          %355 = sbr.rel (%p353) target = $region32
        $region31: #{tpu_custom_call.1} parent=11 // pred_region
          _
        $region32: #{tpu_custom_call.1} parent=11 // pred_fallthru
          _
        // Predicated region
        $region33: #{tpu_custom_call.1} parent=11 // pred_check
          %p356 = pneg %p251
        $region34: #{tpu_custom_call.1} parent=11 // pred_check_branch
          %358 = sbr.rel (%p356) target = $region36
        $region35: #{tpu_custom_call.1} parent=11 // pred_region
          %360 = vsyncadd [#allocation9], 0
          %s361 = sshll.u32 %s9, 4
          %s362 = int_to_ptr.hbm [resolvable:$true] %s361
          %s363 = sshll.u32 [#allocation8], 4
          %s364 = int_to_ptr.vmem [resolvable:$true] %s363
          %369 = dma.hbm_to_vmem [thread:$0]  %s362, 1024, %s364, [#allocation9], 64, 64, 4
        $region36: #{tpu_custom_call.1} parent=11 // pred_fallthru
          _
        // Predicated region
        $region37: #{tpu_custom_call.1} parent=11 // pred_check
          %p370 = pneg %p272
        $region38: #{tpu_custom_call.1} parent=11 // pred_check_branch
          %372 = sbr.rel (%p370) target = $region40
        $region39: #{tpu_custom_call.1} parent=11 // pred_region
          _
        $region40: #{tpu_custom_call.1} parent=11 // pred_fallthru
          _
      $region12: #{tpu_custom_call.1} parent=5 // pred_fallthru
        _
      %p373 = scmp.lt.s32.totalorder %s21, 2
      // Predicated region
      $region41: #{tpu_custom_call.1} parent=5 // pred_check
        %p374 = pneg %p373
      $region42: #{tpu_custom_call.1} parent=5 // pred_check_branch
        %376 = sbr.rel (%p374) target = $region44
      $region43: #{tpu_custom_call.1} parent=5 // pred_region
        // Predicated region
        $region45: #{tpu_custom_call.1} parent=43 // pred_check
          %p377 = pneg %p41
        $region46: #{tpu_custom_call.1} parent=43 // pred_check_branch
          %379 = sbr.rel (%p377) target = $region48
        $region47: #{tpu_custom_call.1} parent=43 // pred_region
          %s380 = smul.u32 16, %s21
          %p381 = scmp.lt.s32.totalorder %s380, 31
          %s382 = scalar_select %p381, %s380, 31
          %s383 = smul.addr %s382, 8
          %s384 = scalar_lea.vmem %s0, %s383
          %s385 = smul.u32 16, %s21
        $region48: #{tpu_custom_call.1} parent=43 // pred_fallthru
          _
        // Predicated region
        $region49: #{tpu_custom_call.1} parent=43 // pred_check
          %p386 = pneg %p67
        $region50: #{tpu_custom_call.1} parent=43 // pred_check_branch
          %388 = sbr.rel (%p386) target = $region52
        $region51: #{tpu_custom_call.1} parent=43 // pred_region
          %p389 = scmp.lt.s32.totalorder %s21, 1
          %s390 = scalar_select %p389, %s21, 1
          %s391 = scalar_lea.vmem %s1, %s390
        $region52: #{tpu_custom_call.1} parent=43 // pred_fallthru
          _
        // Predicated region
        $region53: #{tpu_custom_call.1} parent=43 // pred_check
          %p392 = pneg %p93
        $region54: #{tpu_custom_call.1} parent=43 // pred_check_branch
          %394 = sbr.rel (%p392) target = $region56
        $region55: #{tpu_custom_call.1} parent=43 // pred_region
          %s395 = smul.u32 16, %s21
          %p396 = scmp.lt.s32.totalorder %s395, 31
          %s397 = scalar_select %p396, %s395, 31
          %s398 = smul.addr %s397, 4
          %s399 = scalar_lea.vmem %s2, %s398
          %s400 = smul.u32 16, %s21
        $region56: #{tpu_custom_call.1} parent=43 // pred_fallthru
          _
        // Predicated region
        $region57: #{tpu_custom_call.1} parent=43 // pred_check
          %p401 = pneg %p119
        $region58: #{tpu_custom_call.1} parent=43 // pred_check_branch
          %403 = sbr.rel (%p401) target = $region60
        $region59: #{tpu_custom_call.1} parent=43 // pred_region
          %s404 = smul.u32 16, %s21
          %p405 = scmp.lt.s32.totalorder %s404, 31
          %s406 = scalar_select %p405, %s404, 31
          %s407 = smul.addr %s406, 4
          %s408 = scalar_lea.vmem %s3, %s407
          %s409 = smul.u32 16, %s21
        $region60: #{tpu_custom_call.1} parent=43 // pred_fallthru
          _
      $region44: #{tpu_custom_call.1} parent=5 // pred_fallthru
        _
      %p410 = scmp.le.s32.totalorder 1, %s21
      %p411 = scmp.lt.s32.totalorder %s21, 3
      %p412 = pnand %p410, %p411
      %p413 = pneg %p412
      // Predicated region
      $region61: #{tpu_custom_call.1} parent=5 // pred_check
        _
      $region62: #{tpu_custom_call.1} parent=5 // pred_check_branch
        %415 = sbr.rel (%p412) target = $region64
      $region63: #{tpu_custom_call.1} parent=5 // pred_region
        %s416 = ssub.s32 %s21, 1
        // Predicated region
        $region65: #{tpu_custom_call.1} parent=63 // pred_check
          %p417 = pneg %p146
        $region66: #{tpu_custom_call.1} parent=63 // pred_check_branch
          %419 = sbr.rel (%p417) target = $region68
        $region67: #{tpu_custom_call.1} parent=63 // pred_region
          %421 = dma.done [#allocation3], 128
        $region68: #{tpu_custom_call.1} parent=63 // pred_fallthru
          _
        // Predicated region
        $region69: #{tpu_custom_call.1} parent=63 // pred_check
          %p422 = pneg %p167
        $region70: #{tpu_custom_call.1} parent=63 // pred_check_branch
          %424 = sbr.rel (%p422) target = $region72
        $region71: #{tpu_custom_call.1} parent=63 // pred_region
          %426 = dma.done [#allocation6], 1024
        $region72: #{tpu_custom_call.1} parent=63 // pred_fallthru
          _
        // Predicated region
        $region73: #{tpu_custom_call.1} parent=63 // pred_check
          %p427 = pneg %p209
        $region74: #{tpu_custom_call.1} parent=63 // pred_check_branch
          %429 = sbr.rel (%p427) target = $region76
        $region75: #{tpu_custom_call.1} parent=63 // pred_region
          %431 = dma.done [#allocation6], 1024
        $region76: #{tpu_custom_call.1} parent=63 // pred_fallthru
          _
        // Predicated region
        $region77: #{tpu_custom_call.1} parent=63 // pred_check
          %p432 = pneg %p251
        $region78: #{tpu_custom_call.1} parent=63 // pred_check_branch
          %434 = sbr.rel (%p432) target = $region80
        $region79: #{tpu_custom_call.1} parent=63 // pred_region
          %436 = dma.done [#allocation9], 1024
        $region80: #{tpu_custom_call.1} parent=63 // pred_fallthru
          _
        %s437 = smul.u32 16, %s26
        %p438 = scmp.lt.s32.totalorder %s437, 31
        %s439 = scalar_select %p438, %s437, 31
        %s440 = smul.addr %s439, 8
        %s441 = scalar_lea.vmem %s0, %s440
        %p442 = pneg %p47
        %p443 = pneg %p44
        %p444 = scmp.lt.s32.totalorder %s26, 1
        %s445 = scalar_select %p444, %s26, 1
        %s446 = scalar_lea.vmem %s1, %s445
        %p447 = pneg %p73
        %p448 = pneg %p70
        %s449 = smul.u32 16, %s26
        %p450 = scmp.lt.s32.totalorder %s449, 31
        %s451 = scalar_select %p450, %s449, 31
        %s452 = smul.addr %s451, 4
        %s453 = scalar_lea.vmem %s2, %s452
        %p454 = pneg %p99
        %p455 = pneg %p96
        %s456 = smul.u32 16, %s26
        %p457 = scmp.lt.s32.totalorder %s456, 31
        %s458 = scalar_select %p457, %s456, 31
        %s459 = smul.addr %s458, 4
        %s460 = scalar_lea.vmem %s3, %s459
        %p461 = pneg %p125
        %p462 = pneg %p122
        %p463 = pneg %p146
        %p464 = pneg %p143
        %p465 = pneg %p167
        %p466 = pneg %p164
        %p467 = pneg %p188
        %p468 = pneg %p185
        %p469 = pneg %p209
        %p470 = pneg %p206
        %p471 = pneg %p230
        %p472 = pneg %p227
        %p473 = pneg %p251
        %p474 = pneg %p248
        %p475 = pneg %p272
        %p476 = pneg %p269
        %p477 = pneg %p293
        %p478 = pneg %p290
        %s479 = smul.u32 16, %s26
        %p480 = scmp.lt.s32.totalorder %s479, 31
        %s481 = scalar_select %p480, %s479, 31
        %s482 = smul.addr %s481, 8
        %s483 = scalar_lea.vmem %s0, %s482
        %s484 = smul.u32 16, %s26
        %p485 = scmp.lt.s32.totalorder %s26, 1
        %s486 = scalar_select %p485, %s26, 1
        %s487 = scalar_lea.vmem %s1, %s486
        %s488 = smul.u32 16, %s26
        %p489 = scmp.lt.s32.totalorder %s488, 31
        %s490 = scalar_select %p489, %s488, 31
        %s491 = smul.addr %s490, 4
        %s492 = scalar_lea.vmem %s2, %s491
        %s493 = smul.u32 16, %s26
        %s494 = smul.u32 16, %s26
        %p495 = scmp.lt.s32.totalorder %s494, 31
        %s496 = scalar_select %p495, %s494, 31
        %s497 = smul.addr %s496, 4
        %s498 = scalar_lea.vmem %s3, %s497
        %s499 = smul.u32 16, %s26
        %p501 = scmp.eq.s32.totalorder %s26, 0
        // Predicated region
        $region81: #{tpu_custom_call.1} parent=63 // pred_check
          %p502 = pneg %p501
        $region82: #{tpu_custom_call.1} parent=63 // pred_check_branch
          %504 = sbr.rel (%p502) target = $region84
        $region83: #{tpu_custom_call.1} parent=63 // pred_region
          %505 = vst [vmem:[#allocation10] sm:$0xff] 0.0
          %506 = vst [vmem:[#allocation10 + $0x8] sm:$0xff] 0.0
        $region84: #{tpu_custom_call.1} parent=63 // pred_fallthru
          _
        %v507 = vld [vmem:[%s492] sm:$0xf]
        %v508 = vld [vmem:[%s492 + $0x4] sm:$0xf]
        %v509 = vld [vmem:[%s492 + $0x8] sm:$0xf]
        %v510 = vld [vmem:[%s492 + $0xc] sm:$0xf]
        %v511 = vld [vmem:[%s492 + $0x10] sm:$0xf]
        %v512 = vld [vmem:[%s492 + $0x14] sm:$0xf]
        %v513 = vld [vmem:[%s492 + $0x18] sm:$0xf]
        %v514 = vld [vmem:[%s492 + $0x1c] sm:$0xf]
        %v515 = vld [vmem:[%s492 + $0x20] sm:$0xf]
        %v516 = vld [vmem:[%s492 + $0x24] sm:$0xf]
        %v517 = vld [vmem:[%s492 + $0x28] sm:$0xf]
        %v518 = vld [vmem:[%s492 + $0x2c] sm:$0xf]
        %v519 = vld [vmem:[%s492 + $0x30] sm:$0xf]
        %v520 = vld [vmem:[%s492 + $0x34] sm:$0xf]
        %v521 = vld [vmem:[%s492 + $0x38] sm:$0xf]
        %v522 = vld [vmem:[%s492 + $0x3c] sm:$0xf]
        %v523 = vld [vmem:[#allocation5] sm:$0xf]
        %v524 = vld [vmem:[#allocation5 + $0x4] sm:$0xf]
        %v525 = vld [vmem:[#allocation5 + $0x8] sm:$0xf]
        %v526 = vld [vmem:[#allocation5 + $0xc] sm:$0xf]
        %v527 = vld [vmem:[#allocation5 + $0x10] sm:$0xf]
        %v528 = vld [vmem:[#allocation5 + $0x14] sm:$0xf]
        %v529 = vld [vmem:[#allocation5 + $0x18] sm:$0xf]
        %v530 = vld [vmem:[#allocation5 + $0x1c] sm:$0xf]
        %v531 = vld [vmem:[#allocation5 + $0x20] sm:$0xf]
        %v532 = vld [vmem:[#allocation5 + $0x24] sm:$0xf]
        %v533 = vld [vmem:[#allocation5 + $0x28] sm:$0xf]
        %v534 = vld [vmem:[#allocation5 + $0x2c] sm:$0xf]
        %v535 = vld [vmem:[#allocation5 + $0x30] sm:$0xf]
        %v536 = vld [vmem:[#allocation5 + $0x34] sm:$0xf]
        %v537 = vld [vmem:[#allocation5 + $0x38] sm:$0xf]
        %v538 = vld [vmem:[#allocation5 + $0x3c] sm:$0xf]
        %v539 = vld [vmem:[%s6] sm:$0x1]
        %v541 = vperm.slane %v539, 0
        %v559 = vunpack.c.l.b16 %v507
        %v560 = vunpack.c.l.b16 %v508
        %v561 = vunpack.c.l.b16 %v509
        %v562 = vunpack.c.l.b16 %v510
        %v563 = vunpack.c.l.b16 %v511
        %v564 = vunpack.c.l.b16 %v512
        %v565 = vunpack.c.l.b16 %v513
        %v566 = vunpack.c.l.b16 %v514
        %v567 = vunpack.c.l.b16 %v515
        %v568 = vunpack.c.l.b16 %v516
        %v569 = vunpack.c.l.b16 %v517
        %v570 = vunpack.c.l.b16 %v518
        %v571 = vunpack.c.l.b16 %v519
        %v572 = vunpack.c.l.b16 %v520
        %v573 = vunpack.c.l.b16 %v521
        %v574 = vunpack.c.l.b16 %v522
        %v575 = vpack.c.b16 %v560, %v559
        %v576 = vpack.c.b16 %v562, %v561
        %v577 = vpack.c.b16 %v564, %v563
        %v578 = vpack.c.b16 %v566, %v565
        %v579 = vpack.c.b16 %v568, %v567
        %v580 = vpack.c.b16 %v570, %v569
        %v581 = vpack.c.b16 %v572, %v571
        %v582 = vpack.c.b16 %v574, %v573
        %v607 = vunpack.c.l.b16 %v523
        %v608 = vunpack.c.l.b16 %v524
        %v609 = vunpack.c.l.b16 %v525
        %v610 = vunpack.c.l.b16 %v526
        %v611 = vunpack.c.l.b16 %v527
        %v612 = vunpack.c.l.b16 %v528
        %v613 = vunpack.c.l.b16 %v529
        %v614 = vunpack.c.l.b16 %v530
        %v615 = vunpack.c.l.b16 %v531
        %v616 = vunpack.c.l.b16 %v532
        %v617 = vunpack.c.l.b16 %v533
        %v618 = vunpack.c.l.b16 %v534
        %v619 = vunpack.c.l.b16 %v535
        %v620 = vunpack.c.l.b16 %v536
        %v621 = vunpack.c.l.b16 %v537
        %v622 = vunpack.c.l.b16 %v538
        %v623 = vpack.c.b16 %v608, %v607
        %v624 = vpack.c.b16 %v610, %v609
        %v625 = vpack.c.b16 %v612, %v611
        %v626 = vpack.c.b16 %v614, %v613
        %v627 = vpack.c.b16 %v616, %v615
        %v628 = vpack.c.b16 %v618, %v617
        %v629 = vpack.c.b16 %v620, %v619
        %v630 = vpack.c.b16 %v622, %v621
        %639 = vmatpush.bf16.msra.mxu0 %v630
        %640 = vmatpush.bf16.msra.mxu0 %v629
        %641 = vmatpush.bf16.msra.mxu0 %v628
        %642 = vmatpush.bf16.msra.mxu0 %v627
        %643 = vmatpush.bf16.msra.mxu0 %v626
        %644 = vmatpush.bf16.msra.mxu0 %v625
        %645 = vmatpush.bf16.msra.mxu0 %v624
        %646 = vmatpush.bf16.msra.mxu0 %v623
        %647 = vmatmul.bf16.gmra.mxu0 %v575
        %v648 = vpop.f32.mrf.mxu0
        %v649 = vadd.f32 %v541, %v648
        %v650 = vpop.f32.mrf.mxu0
        %v651 = vadd.f32 %v541, %v650
        %652 = vmatmul.bf16.gmra.mxu0 %v576
        %v653 = vpop.f32.mrf.mxu0
        %v654 = vadd.f32 %v541, %v653
        %v655 = vpop.f32.mrf.mxu0
        %v656 = vadd.f32 %v541, %v655
        %657 = vmatmul.bf16.gmra.mxu0 %v577
        %v658 = vpop.f32.mrf.mxu0
        %v659 = vadd.f32 %v541, %v658
        %v660 = vpop.f32.mrf.mxu0
        %v661 = vadd.f32 %v541, %v660
        %662 = vmatmul.bf16.gmra.mxu0 %v578
        %v663 = vpop.f32.mrf.mxu0
        %v664 = vadd.f32 %v541, %v663
        %v665 = vpop.f32.mrf.mxu0
        %v666 = vadd.f32 %v541, %v665
        %667 = vmatmul.bf16.gmra.mxu0 %v579
        %v668 = vpop.f32.mrf.mxu0
        %v669 = vadd.f32 %v541, %v668
        %v670 = vpop.f32.mrf.mxu0
        %v671 = vadd.f32 %v541, %v670
        %672 = vmatmul.bf16.gmra.mxu0 %v580
        %v673 = vpop.f32.mrf.mxu0
        %v674 = vadd.f32 %v541, %v673
        %v675 = vpop.f32.mrf.mxu0
        %v676 = vadd.f32 %v541, %v675
        %677 = vmatmul.bf16.gmra.mxu0 %v581
        %v678 = vpop.f32.mrf.mxu0
        %v679 = vadd.f32 %v541, %v678
        %v680 = vpop.f32.mrf.mxu0
        %v681 = vadd.f32 %v541, %v680
        %682 = vmatmul.bf16.gmra.mxu0 %v582
        %v683 = vpop.f32.mrf.mxu0
        %v684 = vadd.f32 %v541, %v683
        %v685 = vpop.f32.mrf.mxu0
        %v686 = vadd.f32 %v541, %v685
        %687 = vdwg.mxu0
        %v688 = vmul.f32 %v649, 0.5
        %v689 = vmul.f32 %v651, 0.5
        %v690 = vmul.f32 %v654, 0.5
        %v691 = vmul.f32 %v656, 0.5
        %v692 = vmul.f32 %v659, 0.5
        %v693 = vmul.f32 %v661, 0.5
        %v694 = vmul.f32 %v664, 0.5
        %v695 = vmul.f32 %v666, 0.5
        %v696 = vmul.f32 %v669, 0.5
        %v697 = vmul.f32 %v671, 0.5
        %v698 = vmul.f32 %v674, 0.5
        %v699 = vmul.f32 %v676, 0.5
        %v700 = vmul.f32 %v679, 0.5
        %v701 = vmul.f32 %v681, 0.5
        %v702 = vmul.f32 %v684, 0.5
        %v703 = vmul.f32 %v686, 0.5
        %v704 = vmin.f32 %v688, 14.0
        %v705 = vmin.f32 %v689, 14.0
        %v706 = vmin.f32 %v690, 14.0
        %v707 = vmin.f32 %v691, 14.0
        %v708 = vmin.f32 %v692, 14.0
        %v709 = vmin.f32 %v693, 14.0
        %v710 = vmin.f32 %v694, 14.0
        %v711 = vmin.f32 %v695, 14.0
        %v712 = vmin.f32 %v696, 14.0
        %v713 = vmin.f32 %v697, 14.0
        %v714 = vmin.f32 %v698, 14.0
        %v715 = vmin.f32 %v699, 14.0
        %v716 = vmin.f32 %v700, 14.0
        %v717 = vmin.f32 %v701, 14.0
        %v718 = vmin.f32 %v702, 14.0
        %v719 = vmin.f32 %v703, 14.0
        %v720 = vmul.f32 %v704, 1.442695
        %v721 = vpow.pop %v720
        %v722 = vmul.f32 %v705, 1.442695
        %v723 = vpow.pop %v722
        %v724 = vmul.f32 %v706, 1.442695
        %v725 = vpow.pop %v724
        %v726 = vmul.f32 %v707, 1.442695
        %v727 = vpow.pop %v726
        %v728 = vmul.f32 %v708, 1.442695
        %v729 = vpow.pop %v728
        %v730 = vmul.f32 %v709, 1.442695
        %v731 = vpow.pop %v730
        %v732 = vmul.f32 %v710, 1.442695
        %v733 = vpow.pop %v732
        %v734 = vmul.f32 %v711, 1.442695
        %v735 = vpow.pop %v734
        %v736 = vmul.f32 %v712, 1.442695
        %v737 = vpow.pop %v736
        %v738 = vmul.f32 %v713, 1.442695
        %v739 = vpow.pop %v738
        %v740 = vmul.f32 %v714, 1.442695
        %v741 = vpow.pop %v740
        %v742 = vmul.f32 %v715, 1.442695
        %v743 = vpow.pop %v742
        %v744 = vmul.f32 %v716, 1.442695
        %v745 = vpow.pop %v744
        %v746 = vmul.f32 %v717, 1.442695
        %v747 = vpow.pop %v746
        %v748 = vmul.f32 %v718, 1.442695
        %v749 = vpow.pop %v748
        %v750 = vmul.f32 %v719, 1.442695
        %v751 = vpow.pop %v750
        %v752 = vadd.f32 %v721, 1.0
        %v753 = vlog2.pop %v752
        %v754 = vmul.f32 %v753, 0.6931472
        %v755 = vmul.f32 -0.5, %v721
        %v756 = vadd.f32 %v755, 1.0
        %v757 = vmul.f32 %v756, %v721
        %v758 = vand.u32 2147483647, %v721
        %vm759 = vcmp.lt.f32.partialorder %v758, 0.0004427343
        %v760 = vsel %vm759, %v757, %v754
        %v761 = vadd.f32 %v723, 1.0
        %v762 = vlog2.pop %v761
        %v763 = vmul.f32 %v762, 0.6931472
        %v764 = vmul.f32 -0.5, %v723
        %v765 = vadd.f32 %v764, 1.0
        %v766 = vmul.f32 %v765, %v723
        %v767 = vand.u32 2147483647, %v723
        %vm768 = vcmp.lt.f32.partialorder %v767, 0.0004427343
        %v769 = vsel %vm768, %v766, %v763
        %v770 = vadd.f32 %v725, 1.0
        %v771 = vlog2.pop %v770
        %v772 = vmul.f32 %v771, 0.6931472
        %v773 = vmul.f32 -0.5, %v725
        %v774 = vadd.f32 %v773, 1.0
        %v775 = vmul.f32 %v774, %v725
        %v776 = vand.u32 2147483647, %v725
        %vm777 = vcmp.lt.f32.partialorder %v776, 0.0004427343
        %v778 = vsel %vm777, %v775, %v772
        %v779 = vadd.f32 %v727, 1.0
        %v780 = vlog2.pop %v779
        %v781 = vmul.f32 %v780, 0.6931472
        %v782 = vmul.f32 -0.5, %v727
        %v783 = vadd.f32 %v782, 1.0
        %v784 = vmul.f32 %v783, %v727
        %v785 = vand.u32 2147483647, %v727
        %vm786 = vcmp.lt.f32.partialorder %v785, 0.0004427343
        %v787 = vsel %vm786, %v784, %v781
        %v788 = vadd.f32 %v729, 1.0
        %v789 = vlog2.pop %v788
        %v790 = vmul.f32 %v789, 0.6931472
        %v791 = vmul.f32 -0.5, %v729
        %v792 = vadd.f32 %v791, 1.0
        %v793 = vmul.f32 %v792, %v729
        %v794 = vand.u32 2147483647, %v729
        %vm795 = vcmp.lt.f32.partialorder %v794, 0.0004427343
        %v796 = vsel %vm795, %v793, %v790
        %v797 = vadd.f32 %v731, 1.0
        %v798 = vlog2.pop %v797
        %v799 = vmul.f32 %v798, 0.6931472
        %v800 = vmul.f32 -0.5, %v731
        %v801 = vadd.f32 %v800, 1.0
        %v802 = vmul.f32 %v801, %v731
        %v803 = vand.u32 2147483647, %v731
        %vm804 = vcmp.lt.f32.partialorder %v803, 0.0004427343
        %v805 = vsel %vm804, %v802, %v799
        %v806 = vadd.f32 %v733, 1.0
        %v807 = vlog2.pop %v806
        %v808 = vmul.f32 %v807, 0.6931472
        %v809 = vmul.f32 -0.5, %v733
        %v810 = vadd.f32 %v809, 1.0
        %v811 = vmul.f32 %v810, %v733
        %v812 = vand.u32 2147483647, %v733
        %vm813 = vcmp.lt.f32.partialorder %v812, 0.0004427343
        %v814 = vsel %vm813, %v811, %v808
        %v815 = vadd.f32 %v735, 1.0
        %v816 = vlog2.pop %v815
        %v817 = vmul.f32 %v816, 0.6931472
        %v818 = vmul.f32 -0.5, %v735
        %v819 = vadd.f32 %v818, 1.0
        %v820 = vmul.f32 %v819, %v735
        %v821 = vand.u32 2147483647, %v735
        %vm822 = vcmp.lt.f32.partialorder %v821, 0.0004427343
        %v823 = vsel %vm822, %v820, %v817
        %v824 = vadd.f32 %v737, 1.0
        %v825 = vlog2.pop %v824
        %v826 = vmul.f32 %v825, 0.6931472
        %v827 = vmul.f32 -0.5, %v737
        %v828 = vadd.f32 %v827, 1.0
        %v829 = vmul.f32 %v828, %v737
        %v830 = vand.u32 2147483647, %v737
        %vm831 = vcmp.lt.f32.partialorder %v830, 0.0004427343
        %v832 = vsel %vm831, %v829, %v826
        %v833 = vadd.f32 %v739, 1.0
        %v834 = vlog2.pop %v833
        %v835 = vmul.f32 %v834, 0.6931472
        %v836 = vmul.f32 -0.5, %v739
        %v837 = vadd.f32 %v836, 1.0
        %v838 = vmul.f32 %v837, %v739
        %v839 = vand.u32 2147483647, %v739
        %vm840 = vcmp.lt.f32.partialorder %v839, 0.0004427343
        %v841 = vsel %vm840, %v838, %v835
        %v842 = vadd.f32 %v741, 1.0
        %v843 = vlog2.pop %v842
        %v844 = vmul.f32 %v843, 0.6931472
        %v845 = vmul.f32 -0.5, %v741
        %v846 = vadd.f32 %v845, 1.0
        %v847 = vmul.f32 %v846, %v741
        %v848 = vand.u32 2147483647, %v741
        %vm849 = vcmp.lt.f32.partialorder %v848, 0.0004427343
        %v850 = vsel %vm849, %v847, %v844
        %v851 = vadd.f32 %v743, 1.0
        %v852 = vlog2.pop %v851
        %v853 = vmul.f32 %v852, 0.6931472
        %v854 = vmul.f32 -0.5, %v743
        %v855 = vadd.f32 %v854, 1.0
        %v856 = vmul.f32 %v855, %v743
        %v857 = vand.u32 2147483647, %v743
        %vm858 = vcmp.lt.f32.partialorder %v857, 0.0004427343
        %v859 = vsel %vm858, %v856, %v853
        %v860 = vadd.f32 %v745, 1.0
        %v861 = vlog2.pop %v860
        %v862 = vmul.f32 %v861, 0.6931472
        %v863 = vmul.f32 -0.5, %v745
        %v864 = vadd.f32 %v863, 1.0
        %v865 = vmul.f32 %v864, %v745
        %v866 = vand.u32 2147483647, %v745
        %vm867 = vcmp.lt.f32.partialorder %v866, 0.0004427343
        %v868 = vsel %vm867, %v865, %v862
        %v869 = vadd.f32 %v747, 1.0
        %v870 = vlog2.pop %v869
        %v871 = vmul.f32 %v870, 0.6931472
        %v872 = vmul.f32 -0.5, %v747
        %v873 = vadd.f32 %v872, 1.0
        %v874 = vmul.f32 %v873, %v747
        %v875 = vand.u32 2147483647, %v747
        %vm876 = vcmp.lt.f32.partialorder %v875, 0.0004427343
        %v877 = vsel %vm876, %v874, %v871
        %v878 = vadd.f32 %v749, 1.0
        %v879 = vlog2.pop %v878
        %v880 = vmul.f32 %v879, 0.6931472
        %v881 = vmul.f32 -0.5, %v749
        %v882 = vadd.f32 %v881, 1.0
        %v883 = vmul.f32 %v882, %v749
        %v884 = vand.u32 2147483647, %v749
        %vm885 = vcmp.lt.f32.partialorder %v884, 0.0004427343
        %v886 = vsel %vm885, %v883, %v880
        %v887 = vadd.f32 %v751, 1.0
        %v888 = vlog2.pop %v887
        %v889 = vmul.f32 %v888, 0.6931472
        %v890 = vmul.f32 -0.5, %v751
        %v891 = vadd.f32 %v890, 1.0
        %v892 = vmul.f32 %v891, %v751
        %v893 = vand.u32 2147483647, %v751
        %vm894 = vcmp.lt.f32.partialorder %v893, 0.0004427343
        %v895 = vsel %vm894, %v892, %v889
        %v896 = vrcp.pop 0.5
        %v897 = vmul.f32 0.5, %v896
        %v898 = vsub.f32 1.0, %v897
        %v899 = vmul.f32 %v896, %v898
        %v900 = vadd.f32 %v896, %v899
        %vm901 = vweird.f32 %v896
        %v902 = vsel %vm901, %v896, %v900
        %v903 = vmul.f32 %v760, %v902
        %v904 = vmul.f32 %v769, %v902
        %v905 = vmul.f32 %v778, %v902
        %v906 = vmul.f32 %v787, %v902
        %v907 = vmul.f32 %v796, %v902
        %v908 = vmul.f32 %v805, %v902
        %v909 = vmul.f32 %v814, %v902
        %v910 = vmul.f32 %v823, %v902
        %v911 = vmul.f32 %v832, %v902
        %v912 = vmul.f32 %v841, %v902
        %v913 = vmul.f32 %v850, %v902
        %v914 = vmul.f32 %v859, %v902
        %v915 = vmul.f32 %v868, %v902
        %v916 = vmul.f32 %v877, %v902
        %v917 = vmul.f32 %v886, %v902
        %v918 = vmul.f32 %v895, %v902
        %vm919 = vcmp.gt.f32.partialorder %v688, 14.0
        %vm920 = vcmp.gt.f32.partialorder %v689, 14.0
        %vm921 = vcmp.gt.f32.partialorder %v690, 14.0
        %vm922 = vcmp.gt.f32.partialorder %v691, 14.0
        %vm923 = vcmp.gt.f32.partialorder %v692, 14.0
        %vm924 = vcmp.gt.f32.partialorder %v693, 14.0
        %vm925 = vcmp.gt.f32.partialorder %v694, 14.0
        %vm926 = vcmp.gt.f32.partialorder %v695, 14.0
        %vm927 = vcmp.gt.f32.partialorder %v696, 14.0
        %vm928 = vcmp.gt.f32.partialorder %v697, 14.0
        %vm929 = vcmp.gt.f32.partialorder %v698, 14.0
        %vm930 = vcmp.gt.f32.partialorder %v699, 14.0
        %vm931 = vcmp.gt.f32.partialorder %v700, 14.0
        %vm932 = vcmp.gt.f32.partialorder %v701, 14.0
        %vm933 = vcmp.gt.f32.partialorder %v702, 14.0
        %vm934 = vcmp.gt.f32.partialorder %v703, 14.0
        %v935 = vsel %vm919, %v649, %v903
        %v936 = vsel %vm920, %v651, %v904
        %v937 = vsel %vm921, %v654, %v905
        %v938 = vsel %vm922, %v656, %v906
        %v939 = vsel %vm923, %v659, %v907
        %v940 = vsel %vm924, %v661, %v908
        %v941 = vsel %vm925, %v664, %v909
        %v942 = vsel %vm926, %v666, %v910
        %v943 = vsel %vm927, %v669, %v911
        %v944 = vsel %vm928, %v671, %v912
        %v945 = vsel %vm929, %v674, %v913
        %v946 = vsel %vm930, %v676, %v914
        %v947 = vsel %vm931, %v679, %v915
        %v948 = vsel %vm932, %v681, %v916
        %v949 = vsel %vm933, %v684, %v917
        %v950 = vsel %vm934, %v686, %v918
        %v951 = vpack.c.bf16 %v936, %v935
        %v952 = vpack.c.bf16 %v938, %v937
        %v953 = vpack.c.bf16 %v940, %v939
        %v954 = vpack.c.bf16 %v942, %v941
        %v955 = vpack.c.bf16 %v944, %v943
        %v956 = vpack.c.bf16 %v946, %v945
        %v957 = vpack.c.bf16 %v948, %v947
        %v958 = vpack.c.bf16 %v950, %v949
        %v959 = vld [vmem:[#allocation7] sm:$0xf]
        %v960 = vld [vmem:[#allocation7 + $0x4] sm:$0xf]
        %v961 = vld [vmem:[#allocation7 + $0x8] sm:$0xf]
        %v962 = vld [vmem:[#allocation7 + $0xc] sm:$0xf]
        %v963 = vld [vmem:[#allocation7 + $0x10] sm:$0xf]
        %v964 = vld [vmem:[#allocation7 + $0x14] sm:$0xf]
        %v965 = vld [vmem:[#allocation7 + $0x18] sm:$0xf]
        %v966 = vld [vmem:[#allocation7 + $0x1c] sm:$0xf]
        %v967 = vld [vmem:[#allocation7 + $0x20] sm:$0xf]
        %v968 = vld [vmem:[#allocation7 + $0x24] sm:$0xf]
        %v969 = vld [vmem:[#allocation7 + $0x28] sm:$0xf]
        %v970 = vld [vmem:[#allocation7 + $0x2c] sm:$0xf]
        %v971 = vld [vmem:[#allocation7 + $0x30] sm:$0xf]
        %v972 = vld [vmem:[#allocation7 + $0x34] sm:$0xf]
        %v973 = vld [vmem:[#allocation7 + $0x38] sm:$0xf]
        %v974 = vld [vmem:[#allocation7 + $0x3c] sm:$0xf]
        %v975 = vld [vmem:[%s8] sm:$0x1]
        %v977 = vperm.slane %v975, 0
        %v995 = vunpack.c.l.b16 %v959
        %v996 = vunpack.c.l.b16 %v960
        %v997 = vunpack.c.l.b16 %v961
        %v998 = vunpack.c.l.b16 %v962
        %v999 = vunpack.c.l.b16 %v963
        %v1000 = vunpack.c.l.b16 %v964
        %v1001 = vunpack.c.l.b16 %v965
        %v1002 = vunpack.c.l.b16 %v966
        %v1003 = vunpack.c.l.b16 %v967
        %v1004 = vunpack.c.l.b16 %v968
        %v1005 = vunpack.c.l.b16 %v969
        %v1006 = vunpack.c.l.b16 %v970
        %v1007 = vunpack.c.l.b16 %v971
        %v1008 = vunpack.c.l.b16 %v972
        %v1009 = vunpack.c.l.b16 %v973
        %v1010 = vunpack.c.l.b16 %v974
        %v1011 = vpack.c.b16 %v996, %v995
        %v1012 = vpack.c.b16 %v998, %v997
        %v1013 = vpack.c.b16 %v1000, %v999
        %v1014 = vpack.c.b16 %v1002, %v1001
        %v1015 = vpack.c.b16 %v1004, %v1003
        %v1016 = vpack.c.b16 %v1006, %v1005
        %v1017 = vpack.c.b16 %v1008, %v1007
        %v1018 = vpack.c.b16 %v1010, %v1009
        %1027 = vmatpush.bf16.msra.mxu0 %v1018
        %1028 = vmatpush.bf16.msra.mxu0 %v1017
        %1029 = vmatpush.bf16.msra.mxu0 %v1016
        %1030 = vmatpush.bf16.msra.mxu0 %v1015
        %1031 = vmatpush.bf16.msra.mxu0 %v1014
        %1032 = vmatpush.bf16.msra.mxu0 %v1013
        %1033 = vmatpush.bf16.msra.mxu0 %v1012
        %1034 = vmatpush.bf16.msra.mxu0 %v1011
        %1035 = vmatmul.bf16.gmra.mxu0 %v951
        %v1036 = vpop.f32.mrf.mxu0
        %v1037 = vadd.f32 %v977, %v1036
        %v1038 = vpop.f32.mrf.mxu0
        %v1039 = vadd.f32 %v977, %v1038
        %1040 = vmatmul.bf16.gmra.mxu0 %v952
        %v1041 = vpop.f32.mrf.mxu0
        %v1042 = vadd.f32 %v977, %v1041
        %v1043 = vpop.f32.mrf.mxu0
        %v1044 = vadd.f32 %v977, %v1043
        %1045 = vmatmul.bf16.gmra.mxu0 %v953
        %v1046 = vpop.f32.mrf.mxu0
        %v1047 = vadd.f32 %v977, %v1046
        %v1048 = vpop.f32.mrf.mxu0
        %v1049 = vadd.f32 %v977, %v1048
        %1050 = vmatmul.bf16.gmra.mxu0 %v954
        %v1051 = vpop.f32.mrf.mxu0
        %v1052 = vadd.f32 %v977, %v1051
        %v1053 = vpop.f32.mrf.mxu0
        %v1054 = vadd.f32 %v977, %v1053
        %1055 = vmatmul.bf16.gmra.mxu0 %v955
        %v1056 = vpop.f32.mrf.mxu0
        %v1057 = vadd.f32 %v977, %v1056
        %v1058 = vpop.f32.mrf.mxu0
        %v1059 = vadd.f32 %v977, %v1058
        %1060 = vmatmul.bf16.gmra.mxu0 %v956
        %v1061 = vpop.f32.mrf.mxu0
        %v1062 = vadd.f32 %v977, %v1061
        %v1063 = vpop.f32.mrf.mxu0
        %v1064 = vadd.f32 %v977, %v1063
        %1065 = vmatmul.bf16.gmra.mxu0 %v957
        %v1066 = vpop.f32.mrf.mxu0
        %v1067 = vadd.f32 %v977, %v1066
        %v1068 = vpop.f32.mrf.mxu0
        %v1069 = vadd.f32 %v977, %v1068
        %1070 = vmatmul.bf16.gmra.mxu0 %v958
        %v1071 = vpop.f32.mrf.mxu0
        %v1072 = vadd.f32 %v977, %v1071
        %v1073 = vpop.f32.mrf.mxu0
        %v1074 = vadd.f32 %v977, %v1073
        %1075 = vdwg.mxu0
        %v1076 = vld [vmem:[%s498] sm:$0xf]
        %v1077 = vld [vmem:[%s498 + $0x4] sm:$0xf]
        %v1078 = vld [vmem:[%s498 + $0x8] sm:$0xf]
        %v1079 = vld [vmem:[%s498 + $0xc] sm:$0xf]
        %v1080 = vld [vmem:[%s498 + $0x10] sm:$0xf]
        %v1081 = vld [vmem:[%s498 + $0x14] sm:$0xf]
        %v1082 = vld [vmem:[%s498 + $0x18] sm:$0xf]
        %v1083 = vld [vmem:[%s498 + $0x1c] sm:$0xf]
        %v1084 = vld [vmem:[%s498 + $0x20] sm:$0xf]
        %v1085 = vld [vmem:[%s498 + $0x24] sm:$0xf]
        %v1086 = vld [vmem:[%s498 + $0x28] sm:$0xf]
        %v1087 = vld [vmem:[%s498 + $0x2c] sm:$0xf]
        %v1088 = vld [vmem:[%s498 + $0x30] sm:$0xf]
        %v1089 = vld [vmem:[%s498 + $0x34] sm:$0xf]
        %v1090 = vld [vmem:[%s498 + $0x38] sm:$0xf]
        %v1091 = vld [vmem:[%s498 + $0x3c] sm:$0xf]
        %v1092 = vld [vmem:[#allocation8] sm:$0xf]
        %v1093 = vld [vmem:[#allocation8 + $0x4] sm:$0xf]
        %v1094 = vld [vmem:[#allocation8 + $0x8] sm:$0xf]
        %v1095 = vld [vmem:[#allocation8 + $0xc] sm:$0xf]
        %v1096 = vld [vmem:[#allocation8 + $0x10] sm:$0xf]
        %v1097 = vld [vmem:[#allocation8 + $0x14] sm:$0xf]
        %v1098 = vld [vmem:[#allocation8 + $0x18] sm:$0xf]
        %v1099 = vld [vmem:[#allocation8 + $0x1c] sm:$0xf]
        %v1100 = vld [vmem:[#allocation8 + $0x20] sm:$0xf]
        %v1101 = vld [vmem:[#allocation8 + $0x24] sm:$0xf]
        %v1102 = vld [vmem:[#allocation8 + $0x28] sm:$0xf]
        %v1103 = vld [vmem:[#allocation8 + $0x2c] sm:$0xf]
        %v1104 = vld [vmem:[#allocation8 + $0x30] sm:$0xf]
        %v1105 = vld [vmem:[#allocation8 + $0x34] sm:$0xf]
        %v1106 = vld [vmem:[#allocation8 + $0x38] sm:$0xf]
        %v1107 = vld [vmem:[#allocation8 + $0x3c] sm:$0xf]
        %v1108 = vld [vmem:[%s10] sm:$0x1]
        %v1110 = vperm.slane %v1108, 0
        %v1128 = vunpack.c.l.b16 %v1076
        %v1129 = vunpack.c.l.b16 %v1077
        %v1130 = vunpack.c.l.b16 %v1078
        %v1131 = vunpack.c.l.b16 %v1079
        %v1132 = vunpack.c.l.b16 %v1080
        %v1133 = vunpack.c.l.b16 %v1081
        %v1134 = vunpack.c.l.b16 %v1082
        %v1135 = vunpack.c.l.b16 %v1083
        %v1136 = vunpack.c.l.b16 %v1084
        %v1137 = vunpack.c.l.b16 %v1085
        %v1138 = vunpack.c.l.b16 %v1086
        %v1139 = vunpack.c.l.b16 %v1087
        %v1140 = vunpack.c.l.b16 %v1088
        %v1141 = vunpack.c.l.b16 %v1089
        %v1142 = vunpack.c.l.b16 %v1090
        %v1143 = vunpack.c.l.b16 %v1091
        %v1144 = vpack.c.b16 %v1129, %v1128
        %v1145 = vpack.c.b16 %v1131, %v1130
        %v1146 = vpack.c.b16 %v1133, %v1132
        %v1147 = vpack.c.b16 %v1135, %v1134
        %v1148 = vpack.c.b16 %v1137, %v1136
        %v1149 = vpack.c.b16 %v1139, %v1138
        %v1150 = vpack.c.b16 %v1141, %v1140
        %v1151 = vpack.c.b16 %v1143, %v1142
        %v1176 = vunpack.c.l.b16 %v1092
        %v1177 = vunpack.c.l.b16 %v1093
        %v1178 = vunpack.c.l.b16 %v1094
        %v1179 = vunpack.c.l.b16 %v1095
        %v1180 = vunpack.c.l.b16 %v1096
        %v1181 = vunpack.c.l.b16 %v1097
        %v1182 = vunpack.c.l.b16 %v1098
        %v1183 = vunpack.c.l.b16 %v1099
        %v1184 = vunpack.c.l.b16 %v1100
        %v1185 = vunpack.c.l.b16 %v1101
        %v1186 = vunpack.c.l.b16 %v1102
        %v1187 = vunpack.c.l.b16 %v1103
        %v1188 = vunpack.c.l.b16 %v1104
        %v1189 = vunpack.c.l.b16 %v1105
        %v1190 = vunpack.c.l.b16 %v1106
        %v1191 = vunpack.c.l.b16 %v1107
        %v1192 = vpack.c.b16 %v1177, %v1176
        %v1193 = vpack.c.b16 %v1179, %v1178
        %v1194 = vpack.c.b16 %v1181, %v1180
        %v1195 = vpack.c.b16 %v1183, %v1182
        %v1196 = vpack.c.b16 %v1185, %v1184
        %v1197 = vpack.c.b16 %v1187, %v1186
        %v1198 = vpack.c.b16 %v1189, %v1188
        %v1199 = vpack.c.b16 %v1191, %v1190
        %1208 = vmatpush.bf16.msra.mxu0 %v1199
        %1209 = vmatpush.bf16.msra.mxu0 %v1198
        %1210 = vmatpush.bf16.msra.mxu0 %v1197
        %1211 = vmatpush.bf16.msra.mxu0 %v1196
        %1212 = vmatpush.bf16.msra.mxu0 %v1195
        %1213 = vmatpush.bf16.msra.mxu0 %v1194
        %1214 = vmatpush.bf16.msra.mxu0 %v1193
        %1215 = vmatpush.bf16.msra.mxu0 %v1192
        %1216 = vmatmul.bf16.gmra.mxu0 %v1144
        %v1217 = vpop.f32.mrf.mxu0
        %v1218 = vadd.f32 %v1110, %v1217
        %v1219 = vpop.f32.mrf.mxu0
        %v1220 = vadd.f32 %v1110, %v1219
        %1221 = vmatmul.bf16.gmra.mxu0 %v1145
        %v1222 = vpop.f32.mrf.mxu0
        %v1223 = vadd.f32 %v1110, %v1222
        %v1224 = vpop.f32.mrf.mxu0
        %v1225 = vadd.f32 %v1110, %v1224
        %1226 = vmatmul.bf16.gmra.mxu0 %v1146
        %v1227 = vpop.f32.mrf.mxu0
        %v1228 = vadd.f32 %v1110, %v1227
        %v1229 = vpop.f32.mrf.mxu0
        %v1230 = vadd.f32 %v1110, %v1229
        %1231 = vmatmul.bf16.gmra.mxu0 %v1147
        %v1232 = vpop.f32.mrf.mxu0
        %v1233 = vadd.f32 %v1110, %v1232
        %v1234 = vpop.f32.mrf.mxu0
        %v1235 = vadd.f32 %v1110, %v1234
        %1236 = vmatmul.bf16.gmra.mxu0 %v1148
        %v1237 = vpop.f32.mrf.mxu0
        %v1238 = vadd.f32 %v1110, %v1237
        %v1239 = vpop.f32.mrf.mxu0
        %v1240 = vadd.f32 %v1110, %v1239
        %1241 = vmatmul.bf16.gmra.mxu0 %v1149
        %v1242 = vpop.f32.mrf.mxu0
        %v1243 = vadd.f32 %v1110, %v1242
        %v1244 = vpop.f32.mrf.mxu0
        %v1245 = vadd.f32 %v1110, %v1244
        %1246 = vmatmul.bf16.gmra.mxu0 %v1150
        %v1247 = vpop.f32.mrf.mxu0
        %v1248 = vadd.f32 %v1110, %v1247
        %v1249 = vpop.f32.mrf.mxu0
        %v1250 = vadd.f32 %v1110, %v1249
        %1251 = vmatmul.bf16.gmra.mxu0 %v1151
        %v1252 = vpop.f32.mrf.mxu0
        %v1253 = vadd.f32 %v1110, %v1252
        %v1254 = vpop.f32.mrf.mxu0
        %v1255 = vadd.f32 %v1110, %v1254
        %1256 = vdwg.mxu0
        %v1257 = vld [vmem:[%s483] sm:$0xff]
        %v1258 = vld [vmem:[%s483 + $0x8] sm:$0xff]
        %v1259 = vld [vmem:[%s483 + $0x10] sm:$0xff]
        %v1260 = vld [vmem:[%s483 + $0x18] sm:$0xff]
        %v1261 = vld [vmem:[%s483 + $0x20] sm:$0xff]
        %v1262 = vld [vmem:[%s483 + $0x28] sm:$0xff]
        %v1263 = vld [vmem:[%s483 + $0x30] sm:$0xff]
        %v1264 = vld [vmem:[%s483 + $0x38] sm:$0xff]
        %v1265 = vld [vmem:[%s483 + $0x40] sm:$0xff]
        %v1266 = vld [vmem:[%s483 + $0x48] sm:$0xff]
        %v1267 = vld [vmem:[%s483 + $0x50] sm:$0xff]
        %v1268 = vld [vmem:[%s483 + $0x58] sm:$0xff]
        %v1269 = vld [vmem:[%s483 + $0x60] sm:$0xff]
        %v1270 = vld [vmem:[%s483 + $0x68] sm:$0xff]
        %v1271 = vld [vmem:[%s483 + $0x70] sm:$0xff]
        %v1272 = vld [vmem:[%s483 + $0x78] sm:$0xff]
        %v1273 = vlaneseq
        %v1274 = vand.u32 %v1273, 127
        %1275 = vset.pattern.permute.xlu0 0
        %1276 = vperm.xlu0 %1275, %v1257
        %v1277 = vpop.permute.xlu0 %1276
        %1278 = vset.pattern.permute.xlu0 0
        %1279 = vperm.xlu0 %1278, %v1258
        %v1280 = vpop.permute.xlu0 %1279
        %1281 = vset.pattern.permute.xlu0 0
        %1282 = vperm.xlu0 %1281, %v1259
        %v1283 = vpop.permute.xlu0 %1282
        %1284 = vset.pattern.permute.xlu0 0
        %1285 = vperm.xlu0 %1284, %v1260
        %v1286 = vpop.permute.xlu0 %1285
        %1287 = vset.pattern.permute.xlu0 0
        %1288 = vperm.xlu0 %1287, %v1261
        %v1289 = vpop.permute.xlu0 %1288
        %1290 = vset.pattern.permute.xlu0 0
        %1291 = vperm.xlu0 %1290, %v1262
        %v1292 = vpop.permute.xlu0 %1291
        %1293 = vset.pattern.permute.xlu0 0
        %1294 = vperm.xlu0 %1293, %v1263
        %v1295 = vpop.permute.xlu0 %1294
        %1296 = vset.pattern.permute.xlu0 0
        %1297 = vperm.xlu0 %1296, %v1264
        %v1298 = vpop.permute.xlu0 %1297
        %1299 = vset.pattern.permute.xlu0 0
        %1300 = vperm.xlu0 %1299, %v1265
        %v1301 = vpop.permute.xlu0 %1300
        %1302 = vset.pattern.permute.xlu0 0
        %1303 = vperm.xlu0 %1302, %v1266
        %v1304 = vpop.permute.xlu0 %1303
        %1305 = vset.pattern.permute.xlu0 0
        %1306 = vperm.xlu0 %1305, %v1267
        %v1307 = vpop.permute.xlu0 %1306
        %1308 = vset.pattern.permute.xlu0 0
        %1309 = vperm.xlu0 %1308, %v1268
        %v1310 = vpop.permute.xlu0 %1309
        %1311 = vset.pattern.permute.xlu0 0
        %1312 = vperm.xlu0 %1311, %v1269
        %v1313 = vpop.permute.xlu0 %1312
        %1314 = vset.pattern.permute.xlu0 0
        %1315 = vperm.xlu0 %1314, %v1270
        %v1316 = vpop.permute.xlu0 %1315
        %1317 = vset.pattern.permute.xlu0 0
        %1318 = vperm.xlu0 %1317, %v1271
        %v1319 = vpop.permute.xlu0 %1318
        %1320 = vset.pattern.permute.xlu0 0
        %1321 = vperm.xlu0 %1320, %v1272
        %v1322 = vpop.permute.xlu0 %1321
        %vm1323 = vcmp.eq.s32.totalorder %v1274, %v1277
        %vm1324 = vcmp.eq.s32.totalorder %v1274, %v1280
        %vm1325 = vcmp.eq.s32.totalorder %v1274, %v1283
        %vm1326 = vcmp.eq.s32.totalorder %v1274, %v1286
        %vm1327 = vcmp.eq.s32.totalorder %v1274, %v1289
        %vm1328 = vcmp.eq.s32.totalorder %v1274, %v1292
        %vm1329 = vcmp.eq.s32.totalorder %v1274, %v1295
        %vm1330 = vcmp.eq.s32.totalorder %v1274, %v1298
        %vm1331 = vcmp.eq.s32.totalorder %v1274, %v1301
        %vm1332 = vcmp.eq.s32.totalorder %v1274, %v1304
        %vm1333 = vcmp.eq.s32.totalorder %v1274, %v1307
        %vm1334 = vcmp.eq.s32.totalorder %v1274, %v1310
        %vm1335 = vcmp.eq.s32.totalorder %v1274, %v1313
        %vm1336 = vcmp.eq.s32.totalorder %v1274, %v1316
        %vm1337 = vcmp.eq.s32.totalorder %v1274, %v1319
        %vm1338 = vcmp.eq.s32.totalorder %v1274, %v1322
        %v1339 = vsel %vm1323, 1, 0
        %v1340 = vsel %vm1324, 1, 0
        %v1341 = vsel %vm1325, 1, 0
        %v1342 = vsel %vm1326, 1, 0
        %v1343 = vsel %vm1327, 1, 0
        %v1344 = vsel %vm1328, 1, 0
        %v1345 = vsel %vm1329, 1, 0
        %v1346 = vsel %vm1330, 1, 0
        %v1347 = vsel %vm1331, 1, 0
        %v1348 = vsel %vm1332, 1, 0
        %v1349 = vsel %vm1333, 1, 0
        %v1350 = vsel %vm1334, 1, 0
        %v1351 = vsel %vm1335, 1, 0
        %v1352 = vsel %vm1336, 1, 0
        %v1353 = vsel %vm1337, 1, 0
        %v1354 = vsel %vm1338, 1, 0
        %v1355 = vcvt.s32.f32 %v1339
        %v1356 = vcvt.s32.f32 %v1340
        %v1357 = vcvt.s32.f32 %v1341
        %v1358 = vcvt.s32.f32 %v1342
        %v1359 = vcvt.s32.f32 %v1343
        %v1360 = vcvt.s32.f32 %v1344
        %v1361 = vcvt.s32.f32 %v1345
        %v1362 = vcvt.s32.f32 %v1346
        %v1363 = vcvt.s32.f32 %v1347
        %v1364 = vcvt.s32.f32 %v1348
        %v1365 = vcvt.s32.f32 %v1349
        %v1366 = vcvt.s32.f32 %v1350
        %v1367 = vcvt.s32.f32 %v1351
        %v1368 = vcvt.s32.f32 %v1352
        %v1369 = vcvt.s32.f32 %v1353
        %v1370 = vcvt.s32.f32 %v1354
        %v1371 = vpack.c.bf16 %v1356, %v1355
        %v1372 = vpack.c.bf16 %v1358, %v1357
        %v1373 = vpack.c.bf16 %v1360, %v1359
        %v1374 = vpack.c.bf16 %v1362, %v1361
        %v1375 = vpack.c.bf16 %v1364, %v1363
        %v1376 = vpack.c.bf16 %v1366, %v1365
        %v1377 = vpack.c.bf16 %v1368, %v1367
        %v1378 = vpack.c.bf16 %v1370, %v1369
        %v1379 = vld [vmem:[#allocation2] sm:$0xf]
        %v1380 = vld [vmem:[#allocation2 + $0x4] sm:$0xf]
        %v1383 = vunpack.c.l.b16 %v1379
        %v1384 = vunpack.c.l.b16 %v1380
        %v1385 = vpack.c.b16 %v1384, %v1383
        %vm1387 = vcmask 130048
        %v1389 = vsel %vm1387, %v1371, 0
        %v1392 = vsel %vm1387, %v1372, 0
        %v1395 = vsel %vm1387, %v1373, 0
        %v1398 = vsel %vm1387, %v1374, 0
        %v1401 = vsel %vm1387, %v1375, 0
        %v1404 = vsel %vm1387, %v1376, 0
        %v1407 = vsel %vm1387, %v1377, 0
        %v1410 = vsel %vm1387, %v1378, 0
        %1412 = vmatpush.bf16.msra.mxu0 0
        %1413 = vmatpush.bf16.msra.mxu0 0
        %1414 = vmatpush.bf16.msra.mxu0 0
        %1415 = vmatpush.bf16.msra.mxu0 0
        %1416 = vmatpush.bf16.msra.mxu0 0
        %1417 = vmatpush.bf16.msra.mxu0 0
        %1418 = vmatpush.bf16.msra.mxu0 0
        %1419 = vmatpush.bf16.msra.mxu0 %v1385
        %1420 = vmatmul.bf16.gmra.mxu0 %v1389
        %v1421 = vpop.f32.mrf.mxu0
        %v1422 = vadd.f32 0.0, %v1421
        %v1423 = vpop.f32.mrf.mxu0
        %v1424 = vadd.f32 0.0, %v1423
        %1425 = vmatmul.bf16.gmra.mxu0 %v1392
        %v1426 = vpop.f32.mrf.mxu0
        %v1427 = vadd.f32 0.0, %v1426
        %v1428 = vpop.f32.mrf.mxu0
        %v1429 = vadd.f32 0.0, %v1428
        %1430 = vmatmul.bf16.gmra.mxu0 %v1395
        %v1431 = vpop.f32.mrf.mxu0
        %v1432 = vadd.f32 0.0, %v1431
        %v1433 = vpop.f32.mrf.mxu0
        %v1434 = vadd.f32 0.0, %v1433
        %1435 = vmatmul.bf16.gmra.mxu0 %v1398
        %v1436 = vpop.f32.mrf.mxu0
        %v1437 = vadd.f32 0.0, %v1436
        %v1438 = vpop.f32.mrf.mxu0
        %v1439 = vadd.f32 0.0, %v1438
        %1440 = vmatmul.bf16.gmra.mxu0 %v1401
        %v1441 = vpop.f32.mrf.mxu0
        %v1442 = vadd.f32 0.0, %v1441
        %v1443 = vpop.f32.mrf.mxu0
        %v1444 = vadd.f32 0.0, %v1443
        %1445 = vmatmul.bf16.gmra.mxu0 %v1404
        %v1446 = vpop.f32.mrf.mxu0
        %v1447 = vadd.f32 0.0, %v1446
        %v1448 = vpop.f32.mrf.mxu0
        %v1449 = vadd.f32 0.0, %v1448
        %1450 = vmatmul.bf16.gmra.mxu0 %v1407
        %v1451 = vpop.f32.mrf.mxu0
        %v1452 = vadd.f32 0.0, %v1451
        %v1453 = vpop.f32.mrf.mxu0
        %v1454 = vadd.f32 0.0, %v1453
        %1455 = vmatmul.bf16.gmra.mxu0 %v1410
        %v1456 = vpop.f32.mrf.mxu0
        %v1457 = vadd.f32 0.0, %v1456
        %v1458 = vpop.f32.mrf.mxu0
        %v1459 = vadd.f32 0.0, %v1458
        %1460 = vdwg.mxu0
        %v1461 = vmul.f32 %v1422, %v1037
        %v1462 = vmul.f32 %v1424, %v1039
        %v1463 = vmul.f32 %v1427, %v1042
        %v1464 = vmul.f32 %v1429, %v1044
        %v1465 = vmul.f32 %v1432, %v1047
        %v1466 = vmul.f32 %v1434, %v1049
        %v1467 = vmul.f32 %v1437, %v1052
        %v1468 = vmul.f32 %v1439, %v1054
        %v1469 = vmul.f32 %v1442, %v1057
        %v1470 = vmul.f32 %v1444, %v1059
        %v1471 = vmul.f32 %v1447, %v1062
        %v1472 = vmul.f32 %v1449, %v1064
        %v1473 = vmul.f32 %v1452, %v1067
        %v1474 = vmul.f32 %v1454, %v1069
        %v1475 = vmul.f32 %v1457, %v1072
        %v1476 = vmul.f32 %v1459, %v1074
        %v1477 = vadd.f32 %v1461, %v1218
        %v1478 = vadd.f32 %v1462, %v1220
        %v1479 = vadd.f32 %v1463, %v1223
        %v1480 = vadd.f32 %v1464, %v1225
        %v1481 = vadd.f32 %v1465, %v1228
        %v1482 = vadd.f32 %v1466, %v1230
        %v1483 = vadd.f32 %v1467, %v1233
        %v1484 = vadd.f32 %v1468, %v1235
        %v1485 = vadd.f32 %v1469, %v1238
        %v1486 = vadd.f32 %v1470, %v1240
        %v1487 = vadd.f32 %v1471, %v1243
        %v1488 = vadd.f32 %v1472, %v1245
        %v1489 = vadd.f32 %v1473, %v1248
        %v1490 = vadd.f32 %v1474, %v1250
        %v1491 = vadd.f32 %v1475, %v1253
        %v1492 = vadd.f32 %v1476, %v1255
        %v1493 = vld [vmem:[%s487] sm:$0x1]
        %v1494 = vlaneseq
        %v1495 = vshrl.u32 %v1494, 7
        %v1496 = vadd.s32 %v1495, 8
        %v1497 = vperm.slane %v1493, 0
        %vm1498 = vcmp.eq.s32.totalorder %v1495, %v1497
        %vm1499 = vcmp.eq.s32.totalorder %v1496, %v1497
        %v1500 = vsel %vm1498, 1, 0
        %v1501 = vsel %vm1499, 1, 0
        %v1502 = vcvt.s32.f32 %v1500
        %v1503 = vcvt.s32.f32 %v1501
        %v1504 = vpack.c.bf16 %v1503, %v1502
        %v1505 = vld [vmem:[#allocation10] sm:$0xff]
        %v1506 = vld [vmem:[#allocation10 + $0x8] sm:$0xff]
        %v1507 = vpack.c.bf16 %v1478, %v1477
        %v1508 = vpack.c.bf16 %v1480, %v1479
        %v1509 = vpack.c.bf16 %v1482, %v1481
        %v1510 = vpack.c.bf16 %v1484, %v1483
        %v1511 = vpack.c.bf16 %v1486, %v1485
        %v1512 = vpack.c.bf16 %v1488, %v1487
        %v1513 = vpack.c.bf16 %v1490, %v1489
        %v1514 = vpack.c.bf16 %v1492, %v1491
        %1515 = vmatpush.bf16.msra.mxu0 %v1514
        %1516 = vmatpush.bf16.msra.mxu0 %v1513
        %1517 = vmatpush.bf16.msra.mxu0 %v1512
        %1518 = vmatpush.bf16.msra.mxu0 %v1511
        %1519 = vmatpush.bf16.msra.mxu0 %v1510
        %1520 = vmatpush.bf16.msra.mxu0 %v1509
        %1521 = vmatpush.bf16.msra.mxu0 %v1508
        %1522 = vmatpush.bf16.msra.mxu0 %v1507
        %1523 = vmatmul.bf16.gmra.mxu0 %v1504
        %v1524 = vpop.f32.mrf.mxu0
        %v1525 = vadd.f32 0.0, %v1524
        %v1526 = vpop.f32.mrf.mxu0
        %v1527 = vadd.f32 0.0, %v1526
        %1528 = vdwg.mxu0
        %v1529 = vadd.f32 %v1505, %v1525
        %v1530 = vadd.f32 %v1506, %v1527
        %1531 = vst [vmem:[#allocation10] sm:$0xff] %v1529
        %1532 = vst [vmem:[#allocation10 + $0x8] sm:$0xff] %v1530
        // Predicated region
        $region85: #{tpu_custom_call.1} parent=63 // pred_check
          %p1533 = pneg %p290
        $region86: #{tpu_custom_call.1} parent=63 // pred_check_branch
          %1535 = sbr.rel (%p1533) target = $region88
        $region87: #{tpu_custom_call.1} parent=63 // pred_region
          %1537 = vsyncadd [#allocation4], 0
          %s1538 = sshll.u32 [#allocation10], 4
          %s1539 = int_to_ptr.vmem [resolvable:$true] %s1538
          %s1540 = sshll.u32 %s11, 4
          %s1541 = int_to_ptr.hbm [resolvable:$true] %s1540
          %1546 = dma.vmem_to_hbm [thread:$0]  %s1539, 256, %s1541, [#allocation4], 128, 128, 8
        $region88: #{tpu_custom_call.1} parent=63 // pred_fallthru
          _
        // Predicated region
        $region89: #{tpu_custom_call.1} parent=63 // pred_check
          %p1547 = pneg %p290
        $region90: #{tpu_custom_call.1} parent=63 // pred_check_branch
          %1549 = sbr.rel (%p1547) target = $region92
        $region91: #{tpu_custom_call.1} parent=63 // pred_region
          %1551 = dma.done [#allocation4], 256
        $region92: #{tpu_custom_call.1} parent=63 // pred_fallthru
          _
      $region64: #{tpu_custom_call.1} parent=5 // pred_fallthru
        _
      %p1552 = scmp.le.s32.totalorder 2, %s21
      // Predicated region
      $region93: #{tpu_custom_call.1} parent=5 // pred_check
        %p1553 = pneg %p1552
      $region94: #{tpu_custom_call.1} parent=5 // pred_check_branch
        %1555 = sbr.rel (%p1553) target = $region96
      $region95: #{tpu_custom_call.1} parent=5 // pred_region
        %s1556 = ssub.s32 %s21, 2
      $region96: #{tpu_custom_call.1} parent=5 // pred_fallthru
        _
    $region6: #{tpu_custom_call.1} parent=1 // loop_footer
      %s25 = sadd.s32 1, %s21
    $region7: #{tpu_custom_call.1} parent=1 // loop_footer_branch
      %20 = sbr.rel target = $region3
    $region8: #{tpu_custom_call.1} parent=1 // loop_exit
      _
    %1557 = vsyncpa [#allocation3], 1
    %s1558 = scalar_lea.sflag [#allocation3], 1
    %1559 = vsyncpa %s1558, 1
    %1560 = vsyncpa [#allocation6], 1
    %1561 = vsyncpa [#allocation9], 1
    %1562 = vsyncpa [#allocation4], 1
    %s1563 = scalar_lea.sflag [#allocation4], 1
    %1564 = vsyncpa %s1563, 1

</llo_original>
